<compile_context>
chip_gen: v6e
topology: v6e:2x2x1
jax: 0.10.0
libtpu: 0.0.40
codegen_flags: <defaults>
</compile_context>

<pallas_src>
import functools

import numpy as np
import jax
import jax.numpy as jnp
from jax.experimental import pallas as pl
from jax.experimental.pallas import tpu as pltpu


def _query_and_group_kernel(radius2, xyz_ref, q_ref, src_ref, cent_ref, out_ref):
    # xyz_ref : (1, 3, N)          source coords transposed (points on lanes)
    # q_ref   : (1, TP, 3)         query centroids for this tile
    # src_ref : (1, Ctot, N)       [xyz_embed^T ; features] (points on lanes)
    # cent_ref: (1, Ctot, TP)      centroid embedding, zero-padded to Ctot rows
    # out_ref : (1, S, Ctot, TP)   all nsample slots for this (batch, query tile)
    N = xyz_ref.shape[2]
    TP = q_ref.shape[1]
    S = out_ref.shape[1]

    # ---- once per (batch, query tile): distance field + in-ball mask ----------
    # direct-difference form matches the reference bit-for-bit at the radius
    # boundary (the expanded MXU form can flip boundary points via cancellation).
    d2 = jnp.zeros((TP, N), jnp.float32)
    for k in range(3):
        diff = q_ref[0, :, k:k + 1] - xyz_ref[0, k:k + 1, :]       # (TP, N)
        d2 = d2 + diff * diff
    mask = d2 < radius2                                            # (TP, N) bool
    mask_f = mask.astype(jnp.float32)
    total = jnp.sum(mask_f, axis=-1, keepdims=True)                # (TP, 1)

    col = jax.lax.broadcasted_iota(jnp.int32, (TP, N), 1)
    onehot_idx0 = (col == 0).astype(jnp.float32)                   # empty-ball fallback
    sentinel = jnp.int32(N)

    src = src_ref[0]                                               # (Ctot, N)  resident
    cent = cent_ref[0]                                             # (Ctot, TP) pre-padded

    # ---- per sample slot: pick next in-ball point, gather via one-hot matmul --
    remaining = mask
    onehot_first = onehot_idx0
    for s in range(S):
        masked_col = jnp.where(remaining, col, sentinel)
        first_idx = jnp.min(masked_col, axis=-1, keepdims=True)    # (TP, 1)
        sel_s = (col == first_idx).astype(jnp.float32)             # all-zero if exhausted
        if s == 0:
            onehot_first = jnp.where(total > 0.0, sel_s, onehot_idx0)
            onehot = onehot_first
        else:
            # ball_query pads missing slots with the first in-ball index
            onehot = jnp.where(total > float(s), sel_s, onehot_first)
        remaining = jnp.logical_and(remaining, col != first_idx)

        # grouping_operation == gather == one-hot matmul on the MXU
        gathered = jax.lax.dot_general(
            src, onehot, (((1,), (1,)), ((), ())),
            preferred_element_type=jnp.float32)                    # (Ctot, TP)
        out_ref[0, s, :, :] = (gathered - cent).astype(out_ref.dtype)


def _pick_query_tile(npoint, n):
    """Largest query tile keeping ~8 live (TP, N) f32 temporaries under ~16 MiB,
    staying a multiple of 128 (lane-dense cent/out blocks) unless TP == npoint."""
    max_tp = max(128, (16 * 1024 * 1024) // max(1, 8 * n * 4))
    tp = npoint
    while tp > max_tp and tp % 256 == 0:
        tp //= 2
    return tp


def query_and_group(xyz, xyz_embed, new_xyz, new_xyz_embed, features=None, *,
                    radius=0.1, nsample=8, use_xyz=True, native_layout=False):
    """Pallas QueryAndGroup.forward (ball-query path, sorted_query=False, knn=None).

    Returns (B, E(+C), npoint, nsample) like the PyTorch module, or the
    kernel-native (B, nsample, E(+C), npoint) layout when native_layout=True.
    """
    xyz = xyz.astype(jnp.float32)
    new_xyz = new_xyz.astype(jnp.float32)
    xyz_embed = xyz_embed.astype(jnp.float32)
    new_xyz_embed = new_xyz_embed.astype(jnp.float32)

    B, N, _ = xyz.shape
    P = new_xyz.shape[1]
    E = xyz_embed.shape[2]

    xyz_t = jnp.transpose(xyz, (0, 2, 1))              # (B, 3, N)
    emb_t = jnp.transpose(xyz_embed, (0, 2, 1))        # (B, E, N)
    cent_t = jnp.transpose(new_xyz_embed, (0, 2, 1))   # (B, E, P)

    if features is not None:
        features = features.astype(jnp.float32)
        if use_xyz:
            src = jnp.concatenate([emb_t, features], axis=1)   # (B, E+C, N)
            emb_channels = E
        else:
            src = features
            emb_channels = 0
    else:
        assert use_xyz, "Cannot have no features and not use xyz as a feature!"
        src = emb_t
        emb_channels = E
    Ctot = src.shape[1]

    # Centroid embedding zero-padded to all Ctot channels ONCE (outside the kernel).
    if emb_channels == 0:
        cent_pad = jnp.zeros((B, Ctot, P), jnp.float32)
    elif Ctot > emb_channels:
        cent_pad = jnp.concatenate(
            [cent_t, jnp.zeros((B, Ctot - emb_channels, P), jnp.float32)], axis=1)
    else:
        cent_pad = cent_t

    TP = _pick_query_tile(P, N)
    grid = (B, P // TP)
    kernel = functools.partial(_query_and_group_kernel, float(radius) ** 2)

    out = pl.pallas_call(
        kernel,
        out_shape=jax.ShapeDtypeStruct((B, nsample, Ctot, P), jnp.float32),
        grid=grid,
        in_specs=[
            pl.BlockSpec((1, 3, N), lambda b, j: (b, 0, 0)),
            pl.BlockSpec((1, TP, 3), lambda b, j: (b, j, 0)),
            pl.BlockSpec((1, Ctot, N), lambda b, j: (b, 0, 0)),
            pl.BlockSpec((1, Ctot, TP), lambda b, j: (b, 0, j)),
        ],
        out_specs=pl.BlockSpec((1, nsample, Ctot, TP), lambda b, j: (b, 0, 0, j)),
        compiler_params=pltpu.CompilerParams(
            dimension_semantics=("parallel", "parallel"),
            vmem_limit_bytes=48 * 1024 * 1024),
    )(xyz_t, new_xyz, src, cent_pad)

    if native_layout:
        return out                                     # (B, nsample, Ctot, npoint)
    # PyTorch convention: (B, Ctot, npoint, nsample)
    return jnp.transpose(out, (0, 2, 3, 1))


def reference_query_and_group(xyz, xyz_embed, new_xyz, new_xyz_embed, features,
                              radius, nsample, use_xyz):
    """Pure numpy reference matching the PyTorch ball_query + grouping path."""
    xyz = np.asarray(xyz, np.float32)
    xyz_embed = np.asarray(xyz_embed, np.float32)
    new_xyz = np.asarray(new_xyz, np.float32)
    new_xyz_embed = np.asarray(new_xyz_embed, np.float32)
    B, N, _ = xyz.shape
    P = new_xyz.shape[1]
    r2 = radius * radius
    idx = np.zeros((B, P, nsample), np.int64)
    for b in range(B):
        for p in range(P):
            cnt = 0
            for j in range(N):
                d2 = float(((new_xyz[b, p] - xyz[b, j]) ** 2).sum())
                if d2 < r2:
                    if cnt == 0:
                        idx[b, p, :] = j
                    idx[b, p, cnt] = j
                    cnt += 1
                    if cnt == nsample:
                        break
    emb_t = xyz_embed.transpose(0, 2, 1)        # (B, E, N)
    cent_t = new_xyz_embed.transpose(0, 2, 1)   # (B, E, P)
    grouped_emb = np.stack([emb_t[b][:, idx[b]] for b in range(B)], axis=0)
    grouped_emb = grouped_emb - cent_t[..., None]
    if features is not None:
        features = np.asarray(features, np.float32)
        grouped_feat = np.stack([features[b][:, idx[b]] for b in range(B)], axis=0)
        if use_xyz:
            return np.concatenate([grouped_emb, grouped_feat], axis=1)
        return grouped_feat
    return grouped_emb


if __name__ == "__main__":
    B, N, P, S, E, C = 2, 16, 8, 8, 6, 4   # batch, points, npoint, nsample, emb, feat
    radius = 0.35

    key = jax.random.PRNGKey(0)
    k1, k2, k3 = jax.random.split(key, 3)
    xyz = jax.random.uniform(k1, (B, N, 3), dtype=jnp.float32)
    xyz_embed = jax.random.normal(k2, (B, N, E), dtype=jnp.float32)
    new_xyz = xyz[:, :P, :]                 # centroids = subset of points (as after FPS)
    new_xyz_embed = xyz_embed[:, :P, :]
    features = jax.random.normal(k3, (B, C, N), dtype=jnp.float32)

    out = query_and_group(xyz, xyz_embed, new_xyz, new_xyz_embed, features,
                          radius=radius, nsample=S, use_xyz=True)
    out = jax.block_until_ready(out)

    ref = reference_query_and_group(xyz, xyz_embed, new_xyz, new_xyz_embed,
                                    features, radius, S, True)
    assert out.shape == (B, E + C, P, S), out.shape
    np.testing.assert_allclose(np.asarray(out), ref, rtol=1e-5, atol=1e-5)
    print("KERNEL_OK")
</pallas_src>

<mosaic_0001>
module attributes {stable_mosaic.version = 11 : i64} {
  func.func @_query_and_group_kernel(%arg0: i32, %arg1: i32, %arg2: memref<1x3x16xf32, #tpu.memory_space<vmem>>, %arg3: memref<1x8x3xf32, #tpu.memory_space<vmem>>, %arg4: memref<1x10x16xf32, #tpu.memory_space<vmem>>, %arg5: memref<1x10x8xf32, #tpu.memory_space<vmem>>, %arg6: memref<1x8x10x8xf32, #tpu.memory_space<vmem>>) attributes {dimension_semantics = [#tpu.dimension_semantics<parallel>, #tpu.dimension_semantics<parallel>], iteration_bounds = array<i64: 2, 1>, scalar_prefetch = 0 : i64, scratch_operands = 0 : i64, tpu.core_type = #tpu.core_type<tc>, window_params = [{transform_indices = @transform_0, window_bounds = array<i64: 1, 3, 16>}, {transform_indices = @transform_1, window_bounds = array<i64: 1, 8, 3>}, {transform_indices = @transform_2, window_bounds = array<i64: 1, 10, 16>}, {transform_indices = @transform_3, window_bounds = array<i64: 1, 10, 8>}, {transform_indices = @transform_4, window_bounds = array<i64: 1, 8, 10, 8>}]} {
    %cst = arith.constant 0.000000e+00 : f32
    %0 = vector.broadcast %cst : f32 to vector<8x16xf32>
    %c0 = arith.constant 0 : index
    %c0_0 = arith.constant 0 : index
    %c0_1 = arith.constant 0 : index
    %1 = vector.load %arg3[%c0, %c0_0, %c0_1] : memref<1x8x3xf32, #tpu.memory_space<vmem>>, vector<1x8x1xf32>
    %2 = vector.shape_cast %1 : vector<1x8x1xf32> to vector<8x1xf32>
    %c0_2 = arith.constant 0 : index
    %c0_3 = arith.constant 0 : index
    %c0_4 = arith.constant 0 : index
    %3 = vector.load %arg2[%c0_2, %c0_3, %c0_4] : memref<1x3x16xf32, #tpu.memory_space<vmem>>, vector<1x1x16xf32>
    %4 = vector.shape_cast %3 : vector<1x1x16xf32> to vector<1x16xf32>
    %5 = vector.broadcast %2 : vector<8x1xf32> to vector<8x16xf32>
    %6 = vector.broadcast %4 : vector<1x16xf32> to vector<8x16xf32>
    %7 = arith.subf %5, %6 : vector<8x16xf32>
    %8 = arith.mulf %7, %7 : vector<8x16xf32>
    %9 = arith.addf %0, %8 : vector<8x16xf32>
    %c0_5 = arith.constant 0 : index
    %c0_6 = arith.constant 0 : index
    %c1 = arith.constant 1 : index
    %10 = vector.load %arg3[%c0_5, %c0_6, %c1] : memref<1x8x3xf32, #tpu.memory_space<vmem>>, vector<1x8x1xf32>
    %11 = vector.shape_cast %10 : vector<1x8x1xf32> to vector<8x1xf32>
    %c0_7 = arith.constant 0 : index
    %c1_8 = arith.constant 1 : index
    %c0_9 = arith.constant 0 : index
    %12 = vector.load %arg2[%c0_7, %c1_8, %c0_9] : memref<1x3x16xf32, #tpu.memory_space<vmem>>, vector<1x1x16xf32>
    %13 = vector.shape_cast %12 : vector<1x1x16xf32> to vector<1x16xf32>
    %14 = vector.broadcast %11 : vector<8x1xf32> to vector<8x16xf32>
    %15 = vector.broadcast %13 : vector<1x16xf32> to vector<8x16xf32>
    %16 = arith.subf %14, %15 : vector<8x16xf32>
    %17 = arith.mulf %16, %16 : vector<8x16xf32>
    %18 = arith.addf %9, %17 : vector<8x16xf32>
    %c0_10 = arith.constant 0 : index
    %c0_11 = arith.constant 0 : index
    %c2 = arith.constant 2 : index
    %19 = vector.load %arg3[%c0_10, %c0_11, %c2] : memref<1x8x3xf32, #tpu.memory_space<vmem>>, vector<1x8x1xf32>
    %20 = vector.shape_cast %19 : vector<1x8x1xf32> to vector<8x1xf32>
    %c0_12 = arith.constant 0 : index
    %c2_13 = arith.constant 2 : index
    %c0_14 = arith.constant 0 : index
    %21 = vector.load %arg2[%c0_12, %c2_13, %c0_14] : memref<1x3x16xf32, #tpu.memory_space<vmem>>, vector<1x1x16xf32>
    %22 = vector.shape_cast %21 : vector<1x1x16xf32> to vector<1x16xf32>
    %23 = vector.broadcast %20 : vector<8x1xf32> to vector<8x16xf32>
    %24 = vector.broadcast %22 : vector<1x16xf32> to vector<8x16xf32>
    %25 = arith.subf %23, %24 : vector<8x16xf32>
    %26 = arith.mulf %25, %25 : vector<8x16xf32>
    %27 = arith.addf %18, %26 : vector<8x16xf32>
    %cst_15 = arith.constant 1.225000e-01 : f32
    %28 = vector.broadcast %cst_15 : f32 to vector<8x16xf32>
    %29 = arith.cmpf olt, %27, %28 : vector<8x16xf32>
    %30 = arith.extui %29 : vector<8x16xi1> to vector<8x16xi32>
    %31 = arith.sitofp %30 : vector<8x16xi32> to vector<8x16xf32>
    %cst_16 = arith.constant dense<0.000000e+00> : vector<8xf32>
    %32 = vector.multi_reduction <add>, %31, %cst_16 [1] : vector<8x16xf32> to vector<8xf32>
    %33 = vector.shape_cast %32 : vector<8xf32> to vector<8x1xf32>
    %34 = tpu.iota {dimensions = array<i32: 1>} : vector<8x16xi32>
    %c0_i32 = arith.constant 0 : i32
    %35 = vector.broadcast %c0_i32 : i32 to vector<8x16xi32>
    %36 = arith.cmpi eq, %34, %35 : vector<8x16xi32>
    %37 = arith.extui %36 : vector<8x16xi1> to vector<8x16xi32>
    %38 = arith.sitofp %37 : vector<8x16xi32> to vector<8x16xf32>
    %c0_17 = arith.constant 0 : index
    %c0_18 = arith.constant 0 : index
    %c0_19 = arith.constant 0 : index
    %39 = vector.load %arg4[%c0_17, %c0_18, %c0_19] : memref<1x10x16xf32, #tpu.memory_space<vmem>>, vector<1x10x16xf32>
    %40 = vector.shape_cast %39 : vector<1x10x16xf32> to vector<10x16xf32>
    %c0_20 = arith.constant 0 : index
    %c0_21 = arith.constant 0 : index
    %c0_22 = arith.constant 0 : index
    %41 = vector.load %arg5[%c0_20, %c0_21, %c0_22] : memref<1x10x8xf32, #tpu.memory_space<vmem>>, vector<1x10x8xf32>
    %42 = vector.shape_cast %41 : vector<1x10x8xf32> to vector<10x8xf32>
    %c16_i32 = arith.constant 16 : i32
    %43 = vector.broadcast %c16_i32 : i32 to vector<8x16xi32>
    %44 = arith.select %29, %34, %43 : vector<8x16xi1>, vector<8x16xi32>
    %cst_23 = arith.constant dense<2147483647> : vector<8xi32>
    %45 = vector.multi_reduction <minsi>, %44, %cst_23 [1] : vector<8x16xi32> to vector<8xi32>
    %46 = vector.shape_cast %45 : vector<8xi32> to vector<8x1xi32>
    %47 = vector.broadcast %46 : vector<8x1xi32> to vector<8x16xi32>
    %48 = arith.cmpi eq, %34, %47 : vector<8x16xi32>
    %49 = arith.extui %48 : vector<8x16xi1> to vector<8x16xi32>
    %50 = arith.sitofp %49 : vector<8x16xi32> to vector<8x16xf32>
    %cst_24 = arith.constant 0.000000e+00 : f32
    %51 = vector.broadcast %cst_24 : f32 to vector<8x1xf32>
    %52 = arith.cmpf ogt, %33, %51 : vector<8x1xf32>
    %53 = vector.shape_cast %52 : vector<8x1xi1> to vector<8x1xi1>
    %54 = vector.broadcast %53 : vector<8x1xi1> to vector<8x16xi1>
    %55 = arith.select %54, %50, %38 : vector<8x16xi1>, vector<8x16xf32>
    %56 = vector.broadcast %46 : vector<8x1xi32> to vector<8x16xi32>
    %57 = arith.cmpi ne, %34, %56 : vector<8x16xi32>
    %58 = arith.andi %29, %57 : vector<8x16xi1>
    %cst_25 = arith.constant dense<0.000000e+00> : vector<10x8xf32>
    %59 = tpu.matmul %40, %55, %cst_25 {dimension_numbers = #tpu.dot_dimension_numbers<[1], [1], [0], [0], [0, 0, 1, 0], [], []>} : vector<10x16xf32>, vector<8x16xf32>, vector<10x8xf32> -> vector<10x8xf32>
    %60 = arith.subf %59, %42 : vector<10x8xf32>
    %c0_26 = arith.constant 0 : index
    %c0_27 = arith.constant 0 : index
    %c0_28 = arith.constant 0 : index
    %c0_29 = arith.constant 0 : index
    %61 = vector.load %arg6[%c0_26, %c0_27, %c0_28, %c0_29] : memref<1x8x10x8xf32, #tpu.memory_space<vmem>>, vector<1x1x10x8xf32>
    %62 = vector.shape_cast %61 : vector<1x1x10x8xf32> to vector<10x8xf32>
    %63 = vector.shape_cast %60 : vector<10x8xf32> to vector<1x1x10x8xf32>
    tpu.vector_store %arg6[%c0_26, %c0_27, %c0_28, %c0_29], %63 {strides = array<i32>} : memref<1x8x10x8xf32, #tpu.memory_space<vmem>>, vector<1x1x10x8xf32>,
    %c16_i32_30 = arith.constant 16 : i32
    %64 = vector.broadcast %c16_i32_30 : i32 to vector<8x16xi32>
    %65 = arith.select %58, %34, %64 : vector<8x16xi1>, vector<8x16xi32>
    %cst_31 = arith.constant dense<2147483647> : vector<8xi32>
    %66 = vector.multi_reduction <minsi>, %65, %cst_31 [1] : vector<8x16xi32> to vector<8xi32>
    %67 = vector.shape_cast %66 : vector<8xi32> to vector<8x1xi32>
    %68 = vector.broadcast %67 : vector<8x1xi32> to vector<8x16xi32>
    %69 = arith.cmpi eq, %34, %68 : vector<8x16xi32>
    %70 = arith.extui %69 : vector<8x16xi1> to vector<8x16xi32>
    %71 = arith.sitofp %70 : vector<8x16xi32> to vector<8x16xf32>
    %cst_32 = arith.constant 1.000000e+00 : f32
    %72 = vector.broadcast %cst_32 : f32 to vector<8x1xf32>
    %73 = arith.cmpf ogt, %33, %72 : vector<8x1xf32>
    %74 = vector.shape_cast %73 : vector<8x1xi1> to vector<8x1xi1>
    %75 = vector.broadcast %74 : vector<8x1xi1> to vector<8x16xi1>
    %76 = arith.select %75, %71, %55 : vector<8x16xi1>, vector<8x16xf32>
    %77 = vector.broadcast %67 : vector<8x1xi32> to vector<8x16xi32>
    %78 = arith.cmpi ne, %34, %77 : vector<8x16xi32>
    %79 = arith.andi %58, %78 : vector<8x16xi1>
    %cst_33 = arith.constant dense<0.000000e+00> : vector<10x8xf32>
    %80 = tpu.matmul %40, %76, %cst_33 {dimension_numbers = #tpu.dot_dimension_numbers<[1], [1], [0], [0], [0, 0, 1, 0], [], []>} : vector<10x16xf32>, vector<8x16xf32>, vector<10x8xf32> -> vector<10x8xf32>
    %81 = arith.subf %80, %42 : vector<10x8xf32>
    %c0_34 = arith.constant 0 : index
    %c1_35 = arith.constant 1 : index
    %c0_36 = arith.constant 0 : index
    %c0_37 = arith.constant 0 : index
    %82 = vector.load %arg6[%c0_34, %c1_35, %c0_36, %c0_37] : memref<1x8x10x8xf32, #tpu.memory_space<vmem>>, vector<1x1x10x8xf32>
    %83 = vector.shape_cast %82 : vector<1x1x10x8xf32> to vector<10x8xf32>
    %84 = vector.shape_cast %81 : vector<10x8xf32> to vector<1x1x10x8xf32>
    tpu.vector_store %arg6[%c0_34, %c1_35, %c0_36, %c0_37], %84 {strides = array<i32>} : memref<1x8x10x8xf32, #tpu.memory_space<vmem>>, vector<1x1x10x8xf32>,
    %c16_i32_38 = arith.constant 16 : i32
    %85 = vector.broadcast %c16_i32_38 : i32 to vector<8x16xi32>
    %86 = arith.select %79, %34, %85 : vector<8x16xi1>, vector<8x16xi32>
    %cst_39 = arith.constant dense<2147483647> : vector<8xi32>
    %87 = vector.multi_reduction <minsi>, %86, %cst_39 [1] : vector<8x16xi32> to vector<8xi32>
    %88 = vector.shape_cast %87 : vector<8xi32> to vector<8x1xi32>
    %89 = vector.broadcast %88 : vector<8x1xi32> to vector<8x16xi32>
    %90 = arith.cmpi eq, %34, %89 : vector<8x16xi32>
    %91 = arith.extui %90 : vector<8x16xi1> to vector<8x16xi32>
    %92 = arith.sitofp %91 : vector<8x16xi32> to vector<8x16xf32>
    %cst_40 = arith.constant 2.000000e+00 : f32
    %93 = vector.broadcast %cst_40 : f32 to vector<8x1xf32>
    %94 = arith.cmpf ogt, %33, %93 : vector<8x1xf32>
    %95 = vector.shape_cast %94 : vector<8x1xi1> to vector<8x1xi1>
    %96 = vector.broadcast %95 : vector<8x1xi1> to vector<8x16xi1>
    %97 = arith.select %96, %92, %55 : vector<8x16xi1>, vector<8x16xf32>
    %98 = vector.broadcast %88 : vector<8x1xi32> to vector<8x16xi32>
    %99 = arith.cmpi ne, %34, %98 : vector<8x16xi32>
    %100 = arith.andi %79, %99 : vector<8x16xi1>
    %cst_41 = arith.constant dense<0.000000e+00> : vector<10x8xf32>
    %101 = tpu.matmul %40, %97, %cst_41 {dimension_numbers = #tpu.dot_dimension_numbers<[1], [1], [0], [0], [0, 0, 1, 0], [], []>} : vector<10x16xf32>, vector<8x16xf32>, vector<10x8xf32> -> vector<10x8xf32>
    %102 = arith.subf %101, %42 : vector<10x8xf32>
    %c0_42 = arith.constant 0 : index
    %c2_43 = arith.constant 2 : index
    %c0_44 = arith.constant 0 : index
    %c0_45 = arith.constant 0 : index
    %103 = vector.load %arg6[%c0_42, %c2_43, %c0_44, %c0_45] : memref<1x8x10x8xf32, #tpu.memory_space<vmem>>, vector<1x1x10x8xf32>
    %104 = vector.shape_cast %103 : vector<1x1x10x8xf32> to vector<10x8xf32>
    %105 = vector.shape_cast %102 : vector<10x8xf32> to vector<1x1x10x8xf32>
    tpu.vector_store %arg6[%c0_42, %c2_43, %c0_44, %c0_45], %105 {strides = array<i32>} : memref<1x8x10x8xf32, #tpu.memory_space<vmem>>, vector<1x1x10x8xf32>,
    %c16_i32_46 = arith.constant 16 : i32
    %106 = vector.broadcast %c16_i32_46 : i32 to vector<8x16xi32>
    %107 = arith.select %100, %34, %106 : vector<8x16xi1>, vector<8x16xi32>
    %cst_47 = arith.constant dense<2147483647> : vector<8xi32>
    %108 = vector.multi_reduction <minsi>, %107, %cst_47 [1] : vector<8x16xi32> to vector<8xi32>
    %109 = vector.shape_cast %108 : vector<8xi32> to vector<8x1xi32>
    %110 = vector.broadcast %109 : vector<8x1xi32> to vector<8x16xi32>
    %111 = arith.cmpi eq, %34, %110 : vector<8x16xi32>
    %112 = arith.extui %111 : vector<8x16xi1> to vector<8x16xi32>
    %113 = arith.sitofp %112 : vector<8x16xi32> to vector<8x16xf32>
    %cst_48 = arith.constant 3.000000e+00 : f32
    %114 = vector.broadcast %cst_48 : f32 to vector<8x1xf32>
    %115 = arith.cmpf ogt, %33, %114 : vector<8x1xf32>
    %116 = vector.shape_cast %115 : vector<8x1xi1> to vector<8x1xi1>
    %117 = vector.broadcast %116 : vector<8x1xi1> to vector<8x16xi1>
    %118 = arith.select %117, %113, %55 : vector<8x16xi1>, vector<8x16xf32>
    %119 = vector.broadcast %109 : vector<8x1xi32> to vector<8x16xi32>
    %120 = arith.cmpi ne, %34, %119 : vector<8x16xi32>
    %121 = arith.andi %100, %120 : vector<8x16xi1>
    %cst_49 = arith.constant dense<0.000000e+00> : vector<10x8xf32>
    %122 = tpu.matmul %40, %118, %cst_49 {dimension_numbers = #tpu.dot_dimension_numbers<[1], [1], [0], [0], [0, 0, 1, 0], [], []>} : vector<10x16xf32>, vector<8x16xf32>, vector<10x8xf32> -> vector<10x8xf32>
    %123 = arith.subf %122, %42 : vector<10x8xf32>
    %c0_50 = arith.constant 0 : index
    %c3 = arith.constant 3 : index
    %c0_51 = arith.constant 0 : index
    %c0_52 = arith.constant 0 : index
    %124 = vector.load %arg6[%c0_50, %c3, %c0_51, %c0_52] : memref<1x8x10x8xf32, #tpu.memory_space<vmem>>, vector<1x1x10x8xf32>
    %125 = vector.shape_cast %124 : vector<1x1x10x8xf32> to vector<10x8xf32>
    %126 = vector.shape_cast %123 : vector<10x8xf32> to vector<1x1x10x8xf32>
    tpu.vector_store %arg6[%c0_50, %c3, %c0_51, %c0_52], %126 {strides = array<i32>} : memref<1x8x10x8xf32, #tpu.memory_space<vmem>>, vector<1x1x10x8xf32>,
    %c16_i32_53 = arith.constant 16 : i32
    %127 = vector.broadcast %c16_i32_53 : i32 to vector<8x16xi32>
    %128 = arith.select %121, %34, %127 : vector<8x16xi1>, vector<8x16xi32>
    %cst_54 = arith.constant dense<2147483647> : vector<8xi32>
    %129 = vector.multi_reduction <minsi>, %128, %cst_54 [1] : vector<8x16xi32> to vector<8xi32>
    %130 = vector.shape_cast %129 : vector<8xi32> to vector<8x1xi32>
    %131 = vector.broadcast %130 : vector<8x1xi32> to vector<8x16xi32>
    %132 = arith.cmpi eq, %34, %131 : vector<8x16xi32>
    %133 = arith.extui %132 : vector<8x16xi1> to vector<8x16xi32>
    %134 = arith.sitofp %133 : vector<8x16xi32> to vector<8x16xf32>
    %cst_55 = arith.constant 4.000000e+00 : f32
    %135 = vector.broadcast %cst_55 : f32 to vector<8x1xf32>
    %136 = arith.cmpf ogt, %33, %135 : vector<8x1xf32>
    %137 = vector.shape_cast %136 : vector<8x1xi1> to vector<8x1xi1>
    %138 = vector.broadcast %137 : vector<8x1xi1> to vector<8x16xi1>
    %139 = arith.select %138, %134, %55 : vector<8x16xi1>, vector<8x16xf32>
    %140 = vector.broadcast %130 : vector<8x1xi32> to vector<8x16xi32>
    %141 = arith.cmpi ne, %34, %140 : vector<8x16xi32>
    %142 = arith.andi %121, %141 : vector<8x16xi1>
    %cst_56 = arith.constant dense<0.000000e+00> : vector<10x8xf32>
    %143 = tpu.matmul %40, %139, %cst_56 {dimension_numbers = #tpu.dot_dimension_numbers<[1], [1], [0], [0], [0, 0, 1, 0], [], []>} : vector<10x16xf32>, vector<8x16xf32>, vector<10x8xf32> -> vector<10x8xf32>
    %144 = arith.subf %143, %42 : vector<10x8xf32>
    %c0_57 = arith.constant 0 : index
    %c4 = arith.constant 4 : index
    %c0_58 = arith.constant 0 : index
    %c0_59 = arith.constant 0 : index
    %145 = vector.load %arg6[%c0_57, %c4, %c0_58, %c0_59] : memref<1x8x10x8xf32, #tpu.memory_space<vmem>>, vector<1x1x10x8xf32>
    %146 = vector.shape_cast %145 : vector<1x1x10x8xf32> to vector<10x8xf32>
    %147 = vector.shape_cast %144 : vector<10x8xf32> to vector<1x1x10x8xf32>
    tpu.vector_store %arg6[%c0_57, %c4, %c0_58, %c0_59], %147 {strides = array<i32>} : memref<1x8x10x8xf32, #tpu.memory_space<vmem>>, vector<1x1x10x8xf32>,
    %c16_i32_60 = arith.constant 16 : i32
    %148 = vector.broadcast %c16_i32_60 : i32 to vector<8x16xi32>
    %149 = arith.select %142, %34, %148 : vector<8x16xi1>, vector<8x16xi32>
    %cst_61 = arith.constant dense<2147483647> : vector<8xi32>
    %150 = vector.multi_reduction <minsi>, %149, %cst_61 [1] : vector<8x16xi32> to vector<8xi32>
    %151 = vector.shape_cast %150 : vector<8xi32> to vector<8x1xi32>
    %152 = vector.broadcast %151 : vector<8x1xi32> to vector<8x16xi32>
    %153 = arith.cmpi eq, %34, %152 : vector<8x16xi32>
    %154 = arith.extui %153 : vector<8x16xi1> to vector<8x16xi32>
    %155 = arith.sitofp %154 : vector<8x16xi32> to vector<8x16xf32>
    %cst_62 = arith.constant 5.000000e+00 : f32
    %156 = vector.broadcast %cst_62 : f32 to vector<8x1xf32>
    %157 = arith.cmpf ogt, %33, %156 : vector<8x1xf32>
    %158 = vector.shape_cast %157 : vector<8x1xi1> to vector<8x1xi1>
    %159 = vector.broadcast %158 : vector<8x1xi1> to vector<8x16xi1>
    %160 = arith.select %159, %155, %55 : vector<8x16xi1>, vector<8x16xf32>
    %161 = vector.broadcast %151 : vector<8x1xi32> to vector<8x16xi32>
    %162 = arith.cmpi ne, %34, %161 : vector<8x16xi32>
    %163 = arith.andi %142, %162 : vector<8x16xi1>
    %cst_63 = arith.constant dense<0.000000e+00> : vector<10x8xf32>
    %164 = tpu.matmul %40, %160, %cst_63 {dimension_numbers = #tpu.dot_dimension_numbers<[1], [1], [0], [0], [0, 0, 1, 0], [], []>} : vector<10x16xf32>, vector<8x16xf32>, vector<10x8xf32> -> vector<10x8xf32>
    %165 = arith.subf %164, %42 : vector<10x8xf32>
    %c0_64 = arith.constant 0 : index
    %c5 = arith.constant 5 : index
    %c0_65 = arith.constant 0 : index
    %c0_66 = arith.constant 0 : index
    %166 = vector.load %arg6[%c0_64, %c5, %c0_65, %c0_66] : memref<1x8x10x8xf32, #tpu.memory_space<vmem>>, vector<1x1x10x8xf32>
    %167 = vector.shape_cast %166 : vector<1x1x10x8xf32> to vector<10x8xf32>
    %168 = vector.shape_cast %165 : vector<10x8xf32> to vector<1x1x10x8xf32>
    tpu.vector_store %arg6[%c0_64, %c5, %c0_65, %c0_66], %168 {strides = array<i32>} : memref<1x8x10x8xf32, #tpu.memory_space<vmem>>, vector<1x1x10x8xf32>,
    %c16_i32_67 = arith.constant 16 : i32
    %169 = vector.broadcast %c16_i32_67 : i32 to vector<8x16xi32>
    %170 = arith.select %163, %34, %169 : vector<8x16xi1>, vector<8x16xi32>
    %cst_68 = arith.constant dense<2147483647> : vector<8xi32>
    %171 = vector.multi_reduction <minsi>, %170, %cst_68 [1] : vector<8x16xi32> to vector<8xi32>
    %172 = vector.shape_cast %171 : vector<8xi32> to vector<8x1xi32>
    %173 = vector.broadcast %172 : vector<8x1xi32> to vector<8x16xi32>
    %174 = arith.cmpi eq, %34, %173 : vector<8x16xi32>
    %175 = arith.extui %174 : vector<8x16xi1> to vector<8x16xi32>
    %176 = arith.sitofp %175 : vector<8x16xi32> to vector<8x16xf32>
    %cst_69 = arith.constant 6.000000e+00 : f32
    %177 = vector.broadcast %cst_69 : f32 to vector<8x1xf32>
    %178 = arith.cmpf ogt, %33, %177 : vector<8x1xf32>
    %179 = vector.shape_cast %178 : vector<8x1xi1> to vector<8x1xi1>
    %180 = vector.broadcast %179 : vector<8x1xi1> to vector<8x16xi1>
    %181 = arith.select %180, %176, %55 : vector<8x16xi1>, vector<8x16xf32>
    %182 = vector.broadcast %172 : vector<8x1xi32> to vector<8x16xi32>
    %183 = arith.cmpi ne, %34, %182 : vector<8x16xi32>
    %184 = arith.andi %163, %183 : vector<8x16xi1>
    %cst_70 = arith.constant dense<0.000000e+00> : vector<10x8xf32>
    %185 = tpu.matmul %40, %181, %cst_70 {dimension_numbers = #tpu.dot_dimension_numbers<[1], [1], [0], [0], [0, 0, 1, 0], [], []>} : vector<10x16xf32>, vector<8x16xf32>, vector<10x8xf32> -> vector<10x8xf32>
    %186 = arith.subf %185, %42 : vector<10x8xf32>
    %c0_71 = arith.constant 0 : index
    %c6 = arith.constant 6 : index
    %c0_72 = arith.constant 0 : index
    %c0_73 = arith.constant 0 : index
    %187 = vector.load %arg6[%c0_71, %c6, %c0_72, %c0_73] : memref<1x8x10x8xf32, #tpu.memory_space<vmem>>, vector<1x1x10x8xf32>
    %188 = vector.shape_cast %187 : vector<1x1x10x8xf32> to vector<10x8xf32>
    %189 = vector.shape_cast %186 : vector<10x8xf32> to vector<1x1x10x8xf32>
    tpu.vector_store %arg6[%c0_71, %c6, %c0_72, %c0_73], %189 {strides = array<i32>} : memref<1x8x10x8xf32, #tpu.memory_space<vmem>>, vector<1x1x10x8xf32>,
    %c16_i32_74 = arith.constant 16 : i32
    %190 = vector.broadcast %c16_i32_74 : i32 to vector<8x16xi32>
    %191 = arith.select %184, %34, %190 : vector<8x16xi1>, vector<8x16xi32>
    %cst_75 = arith.constant dense<2147483647> : vector<8xi32>
    %192 = vector.multi_reduction <minsi>, %191, %cst_75 [1] : vector<8x16xi32> to vector<8xi32>
    %193 = vector.shape_cast %192 : vector<8xi32> to vector<8x1xi32>
    %194 = vector.broadcast %193 : vector<8x1xi32> to vector<8x16xi32>
    %195 = arith.cmpi eq, %34, %194 : vector<8x16xi32>
    %196 = arith.extui %195 : vector<8x16xi1> to vector<8x16xi32>
    %197 = arith.sitofp %196 : vector<8x16xi32> to vector<8x16xf32>
    %cst_76 = arith.constant 7.000000e+00 : f32
    %198 = vector.broadcast %cst_76 : f32 to vector<8x1xf32>
    %199 = arith.cmpf ogt, %33, %198 : vector<8x1xf32>
    %200 = vector.shape_cast %199 : vector<8x1xi1> to vector<8x1xi1>
    %201 = vector.broadcast %200 : vector<8x1xi1> to vector<8x16xi1>
    %202 = arith.select %201, %197, %55 : vector<8x16xi1>, vector<8x16xf32>
    %cst_77 = arith.constant dense<0.000000e+00> : vector<10x8xf32>
    %203 = tpu.matmul %40, %202, %cst_77 {dimension_numbers = #tpu.dot_dimension_numbers<[1], [1], [0], [0], [0, 0, 1, 0], [], []>} : vector<10x16xf32>, vector<8x16xf32>, vector<10x8xf32> -> vector<10x8xf32>
    %204 = arith.subf %203, %42 : vector<10x8xf32>
    %c0_78 = arith.constant 0 : index
    %c7 = arith.constant 7 : index
    %c0_79 = arith.constant 0 : index
    %c0_80 = arith.constant 0 : index
    %205 = vector.load %arg6[%c0_78, %c7, %c0_79, %c0_80] : memref<1x8x10x8xf32, #tpu.memory_space<vmem>>, vector<1x1x10x8xf32>
    %206 = vector.shape_cast %205 : vector<1x1x10x8xf32> to vector<10x8xf32>
    %207 = vector.shape_cast %204 : vector<10x8xf32> to vector<1x1x10x8xf32>
    tpu.vector_store %arg6[%c0_78, %c7, %c0_79, %c0_80], %207 {strides = array<i32>} : memref<1x8x10x8xf32, #tpu.memory_space<vmem>>, vector<1x1x10x8xf32>,
    return
  }
  func.func @transform_0(%arg0: i32, %arg1: i32) -> (i32, i32, i32) {
    %c0_i32 = arith.constant 0 : i32
    %c0_i32_0 = arith.constant 0 : i32
    %c0_i32_1 = arith.constant 0 : i32
    return %arg0, %c0_i32, %c0_i32_0 : i32, i32, i32
  }
  func.func @transform_1(%arg0: i32, %arg1: i32) -> (i32, i32, i32) {
    %c0_i32 = arith.constant 0 : i32
    %c0_i32_0 = arith.constant 0 : i32
    return %arg0, %arg1, %c0_i32 : i32, i32, i32
  }
  func.func @transform_2(%arg0: i32, %arg1: i32) -> (i32, i32, i32) {
    %c0_i32 = arith.constant 0 : i32
    %c0_i32_0 = arith.constant 0 : i32
    %c0_i32_1 = arith.constant 0 : i32
    return %arg0, %c0_i32, %c0_i32_0 : i32, i32, i32
  }
  func.func @transform_3(%arg0: i32, %arg1: i32) -> (i32, i32, i32) {
    %c0_i32 = arith.constant 0 : i32
    %c0_i32_0 = arith.constant 0 : i32
    return %arg0, %c0_i32, %arg1 : i32, i32, i32
  }
  func.func @transform_4(%arg0: i32, %arg1: i32) -> (i32, i32, i32, i32) {
    %c0_i32 = arith.constant 0 : i32
    %c0_i32_0 = arith.constant 0 : i32
    %c0_i32_1 = arith.constant 0 : i32
    return %arg0, %c0_i32, %c0_i32_0, %arg1 : i32, i32, i32, i32
  }
}

</mosaic_0001>

<llo_original>
// kernel: tpu_custom_call.1
$region0: #{tpu_custom_call.1}
  #allocation0 [shape = 'u32[]', space=smem, size = 0x4, offset = 0x4, fixed_abs, tag = 'smem constant byte address 0x4 - core index']
  #allocation1 [shape = 'u32[144,128]{1,0:T(1,128)}', space=vmem, size = 0x12000, scoped, tag = 'internal scratch']
  %s0 = inlined_call_operand.vmem [shape: f32[2,3,16], index: 0, kind: input, shape index: {}]
  %s1 = inlined_call_operand.vmem [shape: f32[2,8,3], index: 1, kind: input, shape index: {}]
  %s2 = inlined_call_operand.vmem [shape: f32[2,10,16], index: 2, kind: input, shape index: {}]
  %s3 = inlined_call_operand.vmem [shape: f32[2,10,8], index: 3, kind: input, shape index: {}]
  %s4 = inlined_call_operand.vmem [shape: f32[2,8,10,8], index: 4, kind: output, shape index: {}]
  %s5 = sld [smem:[#allocation0]]
  $region49: #{tpu_custom_call.1} parent=0
    _
  %s7 = ssub.s32 1, %s5
  %s8 = scalar_select 0, %s7, %s5
  loop: start=0, step=1, limit=4
  $region2: #{tpu_custom_call.1} parent=0 // loop_pre_header
    _
  $region3: #{tpu_custom_call.1} parent=0 // loop_header
    %s10 = sphi 0, %s14
    %p11 = scmp.ge.s32.totalorder %s10, 4
    %s17 = sphi 0, %s29
    %s18 = sphi 0, %s25
    %s19 = sphi 0, %s17
    %s20 = sphi 0, %s18
    %s21 = sphi 0, %s19
    %s22 = sphi 0, %s20
    %s32 = sphi 0, %s34
    %s35 = sphi 0, %s32
    %s36 = sphi 0, %s35
    %s52 = sphi 0, %s36
    %s60 = sphi 0, %s62
    %s63 = sphi 0, %s60
    %s64 = sphi 0, %s63
    %s80 = sphi 0, %s64
    %s86 = sphi 0, %s88
    %s89 = sphi 0, %s86
    %s90 = sphi 0, %s89
    %s106 = sphi 0, %s90
    %s114 = sphi 0, %s116
    %s117 = sphi 0, %s114
    %s118 = sphi 0, %s117
    %s134 = sphi 0, %s118
    %s142 = sphi 0, %s144
    %s145 = sphi 0, %s142
    %s146 = sphi 0, %s145
    %s162 = sphi 0, %s146
  $region4: #{tpu_custom_call.1} parent=0 // loop_header_branch
    %13 = sbr.rel (%p11) target = $region8
  $region5: #{tpu_custom_call.1} parent=0 // loop_body
    %s15 = ssub.s32 %s10, 1
    %s16 = ssub.s32 %s10, 2
    %s23 = sadd.s32 1, %s18
    %p24 = scmp.ge.s32.totalorder %s23, 1
    %s25 = scalar_select %p24, 0, %s23
    %s26 = sadd.s32 1, %s17
    %s27 = scalar_select %p24, %s26, %s17
    %p28 = scmp.ge.s32.totalorder %s27, 2
    %s29 = scalar_select %p28, 0, %s27
    %s30 = ssub.s32 %s17, %s29
    %p31 = scmp.eq.s32.totalorder %s30, 0
    %s33 = sadd.s32 %s32, 1
    %s34 = scalar_select %p31, %s32, %s33
    %p37 = pneg %p31
    %p38 = scmp.eq.s32.totalorder %s10, 1
    %p39 = por %p37, %p38
    %p40 = scmp.ne.s32.totalorder %s32, %s35
    %p41 = scmp.eq.s32.totalorder %s10, 0
    %p42 = por %p40, %p41
    %p43 = scmp.ne.s32.totalorder %s32, %s35
    %p44 = scmp.eq.s32.totalorder %s15, 1
    %p45 = por %p43, %p44
    %p46 = scmp.ne.s32.totalorder %s35, %s36
    %p47 = scmp.eq.s32.totalorder %s15, 0
    %p48 = por %p46, %p47
    %p49 = scmp.ne.s32.totalorder %s35, %s36
    %p50 = scmp.eq.s32.totalorder %s16, 1
    %p51 = por %p49, %p50
    %p53 = scmp.ne.s32.totalorder %s36, %s52
    %p54 = scmp.eq.s32.totalorder %s16, 0
    %p55 = por %p53, %p54
    %s56 = ssub.s32 %s17, %s29
    %s57 = ssub.s32 %s18, %s25
    %s58 = sor.u32 %s56, %s57
    %p59 = scmp.eq.s32.totalorder %s58, 0
    %s61 = sadd.s32 %s60, 1
    %s62 = scalar_select %p59, %s60, %s61
    %p65 = pneg %p59
    %p66 = scmp.eq.s32.totalorder %s10, 1
    %p67 = por %p65, %p66
    %p68 = scmp.ne.s32.totalorder %s60, %s63
    %p69 = scmp.eq.s32.totalorder %s10, 0
    %p70 = por %p68, %p69
    %p71 = scmp.ne.s32.totalorder %s60, %s63
    %p72 = scmp.eq.s32.totalorder %s15, 1
    %p73 = por %p71, %p72
    %p74 = scmp.ne.s32.totalorder %s63, %s64
    %p75 = scmp.eq.s32.totalorder %s15, 0
    %p76 = por %p74, %p75
    %p77 = scmp.ne.s32.totalorder %s63, %s64
    %p78 = scmp.eq.s32.totalorder %s16, 1
    %p79 = por %p77, %p78
    %p81 = scmp.ne.s32.totalorder %s64, %s80
    %p82 = scmp.eq.s32.totalorder %s16, 0
    %p83 = por %p81, %p82
    %s84 = ssub.s32 %s17, %s29
    %p85 = scmp.eq.s32.totalorder %s84, 0
    %s87 = sadd.s32 %s86, 1
    %s88 = scalar_select %p85, %s86, %s87
    %p91 = pneg %p85
    %p92 = scmp.eq.s32.totalorder %s10, 1
    %p93 = por %p91, %p92
    %p94 = scmp.ne.s32.totalorder %s86, %s89
    %p95 = scmp.eq.s32.totalorder %s10, 0
    %p96 = por %p94, %p95
    %p97 = scmp.ne.s32.totalorder %s86, %s89
    %p98 = scmp.eq.s32.totalorder %s15, 1
    %p99 = por %p97, %p98
    %p100 = scmp.ne.s32.totalorder %s89, %s90
    %p101 = scmp.eq.s32.totalorder %s15, 0
    %p102 = por %p100, %p101
    %p103 = scmp.ne.s32.totalorder %s89, %s90
    %p104 = scmp.eq.s32.totalorder %s16, 1
    %p105 = por %p103, %p104
    %p107 = scmp.ne.s32.totalorder %s90, %s106
    %p108 = scmp.eq.s32.totalorder %s16, 0
    %p109 = por %p107, %p108
    %s110 = ssub.s32 %s17, %s29
    %s111 = ssub.s32 %s18, %s25
    %s112 = sor.u32 %s110, %s111
    %p113 = scmp.eq.s32.totalorder %s112, 0
    %s115 = sadd.s32 %s114, 1
    %s116 = scalar_select %p113, %s114, %s115
    %p119 = pneg %p113
    %p120 = scmp.eq.s32.totalorder %s10, 1
    %p121 = por %p119, %p120
    %p122 = scmp.ne.s32.totalorder %s114, %s117
    %p123 = scmp.eq.s32.totalorder %s10, 0
    %p124 = por %p122, %p123
    %p125 = scmp.ne.s32.totalorder %s114, %s117
    %p126 = scmp.eq.s32.totalorder %s15, 1
    %p127 = por %p125, %p126
    %p128 = scmp.ne.s32.totalorder %s117, %s118
    %p129 = scmp.eq.s32.totalorder %s15, 0
    %p130 = por %p128, %p129
    %p131 = scmp.ne.s32.totalorder %s117, %s118
    %p132 = scmp.eq.s32.totalorder %s16, 1
    %p133 = por %p131, %p132
    %p135 = scmp.ne.s32.totalorder %s118, %s134
    %p136 = scmp.eq.s32.totalorder %s16, 0
    %p137 = por %p135, %p136
    %s138 = ssub.s32 %s17, %s29
    %s139 = ssub.s32 %s18, %s25
    %s140 = sor.u32 %s138, %s139
    %p141 = scmp.eq.s32.totalorder %s140, 0
    %s143 = sadd.s32 %s142, 1
    %s144 = scalar_select %p141, %s142, %s143
    %p147 = pneg %p141
    %p148 = scmp.eq.s32.totalorder %s10, 1
    %p149 = por %p147, %p148
    %p150 = scmp.ne.s32.totalorder %s142, %s145
    %p151 = scmp.eq.s32.totalorder %s10, 0
    %p152 = por %p150, %p151
    %p153 = scmp.ne.s32.totalorder %s142, %s145
    %p154 = scmp.eq.s32.totalorder %s15, 1
    %p155 = por %p153, %p154
    %p156 = scmp.ne.s32.totalorder %s145, %s146
    %p157 = scmp.eq.s32.totalorder %s15, 0
    %p158 = por %p156, %p157
    %p159 = scmp.ne.s32.totalorder %s145, %s146
    %p160 = scmp.eq.s32.totalorder %s16, 1
    %p161 = por %p159, %p160
    %p163 = scmp.ne.s32.totalorder %s146, %s162
    %p164 = scmp.eq.s32.totalorder %s16, 0
    %p165 = por %p163, %p164
    %p166 = scmp.le.s32.totalorder 1, %s10
    %p167 = scmp.lt.s32.totalorder %s10, 3
    %p168 = pnand %p166, %p167
    %p169 = pneg %p168
    // Predicated region
    $region9: #{tpu_custom_call.1} parent=5 // pred_check
      _
    $region10: #{tpu_custom_call.1} parent=5 // pred_check_branch
      %171 = sbr.rel (%p168) target = $region12
    $region11: #{tpu_custom_call.1} parent=5 // pred_region
      %s172 = ssub.s32 %s10, 1
    $region12: #{tpu_custom_call.1} parent=5 // pred_fallthru
      _
    %p173 = scmp.lt.s32.totalorder %s10, 2
    // Predicated region
    $region13: #{tpu_custom_call.1} parent=5 // pred_check
      %p174 = pneg %p173
    $region14: #{tpu_custom_call.1} parent=5 // pred_check_branch
      %176 = sbr.rel (%p174) target = $region16
    $region15: #{tpu_custom_call.1} parent=5 // pred_region
      // Predicated region
      $region17: #{tpu_custom_call.1} parent=15 // pred_check
        %p177 = pneg %p42
      $region18: #{tpu_custom_call.1} parent=15 // pred_check_branch
        %179 = sbr.rel (%p177) target = $region20
      $region19: #{tpu_custom_call.1} parent=15 // pred_region
        %p180 = scmp.lt.s32.totalorder %s17, 1
        %s181 = scalar_select %p180, %s17, 1
        %s182 = smul.addr %s181, 4
        %s183 = scalar_lea.vmem %s0, %s182
      $region20: #{tpu_custom_call.1} parent=15 // pred_fallthru
        _
      // Predicated region
      $region21: #{tpu_custom_call.1} parent=15 // pred_check
        %p184 = pneg %p70
      $region22: #{tpu_custom_call.1} parent=15 // pred_check_branch
        %186 = sbr.rel (%p184) target = $region24
      $region23: #{tpu_custom_call.1} parent=15 // pred_region
        %p187 = scmp.lt.s32.totalorder %s17, 1
        %s188 = scalar_select %p187, %s17, 1
        %p189 = scmp.lt.s32.totalorder %s18, 0
        %s190 = scalar_select %p189, %s18, 0
        %s191 = sadd.s32 %s190, %s188
        %s192 = smul.addr %s191, 8
        %s193 = scalar_lea.vmem %s1, %s192
      $region24: #{tpu_custom_call.1} parent=15 // pred_fallthru
        _
      // Predicated region
      $region25: #{tpu_custom_call.1} parent=15 // pred_check
        %p194 = pneg %p96
      $region26: #{tpu_custom_call.1} parent=15 // pred_check_branch
        %196 = sbr.rel (%p194) target = $region28
      $region27: #{tpu_custom_call.1} parent=15 // pred_region
        %p197 = scmp.lt.s32.totalorder %s17, 1
        %s198 = scalar_select %p197, %s17, 1
        %s199 = smul.addr %s198, 2
        %s200 = smul.addr %s199, 8
        %s201 = scalar_lea.vmem %s2, %s200
      $region28: #{tpu_custom_call.1} parent=15 // pred_fallthru
        _
      // Predicated region
      $region29: #{tpu_custom_call.1} parent=15 // pred_check
        %p202 = pneg %p124
      $region30: #{tpu_custom_call.1} parent=15 // pred_check_branch
        %204 = sbr.rel (%p202) target = $region32
      $region31: #{tpu_custom_call.1} parent=15 // pred_region
        %p205 = scmp.lt.s32.totalorder %s17, 1
        %s206 = scalar_select %p205, %s17, 1
        %p207 = scmp.lt.s32.totalorder %s18, 0
        %s208 = scalar_select %p207, %s18, 0
        %s209 = smul.addr %s206, 2
        %s210 = sadd.s32 %s208, %s209
        %s211 = smul.addr %s210, 8
        %s212 = scalar_lea.vmem %s3, %s211
      $region32: #{tpu_custom_call.1} parent=15 // pred_fallthru
        _
    $region16: #{tpu_custom_call.1} parent=5 // pred_fallthru
      _
    %p213 = scmp.le.s32.totalorder 1, %s10
    %p214 = scmp.lt.s32.totalorder %s10, 3
    %p215 = pnand %p213, %p214
    %p216 = pneg %p215
    // Predicated region
    $region33: #{tpu_custom_call.1} parent=5 // pred_check
      _
    $region34: #{tpu_custom_call.1} parent=5 // pred_check_branch
      %218 = sbr.rel (%p215) target = $region36
    $region35: #{tpu_custom_call.1} parent=5 // pred_region
      %s219 = ssub.s32 %s10, 1
      %p220 = scmp.lt.s32.totalorder %s19, 1
      %s221 = scalar_select %p220, %s19, 1
      %s222 = smul.addr %s221, 4
      %s223 = scalar_lea.vmem %s0, %s222
      %p224 = pneg %p48
      %p225 = pneg %p45
      %p226 = scmp.lt.s32.totalorder %s19, 1
      %s227 = scalar_select %p226, %s19, 1
      %p228 = scmp.lt.s32.totalorder %s20, 0
      %s229 = scalar_select %p228, %s20, 0
      %s230 = sadd.s32 %s229, %s227
      %s231 = smul.addr %s230, 8
      %s232 = scalar_lea.vmem %s1, %s231
      %p233 = pneg %p76
      %p234 = pneg %p73
      %p235 = scmp.lt.s32.totalorder %s19, 1
      %s236 = scalar_select %p235, %s19, 1
      %s237 = smul.addr %s236, 2
      %s238 = smul.addr %s237, 8
      %s239 = scalar_lea.vmem %s2, %s238
      %p240 = pneg %p102
      %p241 = pneg %p99
      %p242 = scmp.lt.s32.totalorder %s19, 1
      %s243 = scalar_select %p242, %s19, 1
      %p244 = scmp.lt.s32.totalorder %s20, 0
      %s245 = scalar_select %p244, %s20, 0
      %s246 = smul.addr %s243, 2
      %s247 = sadd.s32 %s245, %s246
      %s248 = smul.addr %s247, 8
      %s249 = scalar_lea.vmem %s3, %s248
      %p250 = pneg %p130
      %p251 = pneg %p127
      %p252 = pneg %p158
      %p253 = pneg %p155
      %p254 = scmp.lt.s32.totalorder %s19, 1
      %s255 = scalar_select %p254, %s19, 1
      %p256 = scmp.lt.s32.totalorder %s20, 0
      %s257 = scalar_select %p256, %s20, 0
      %s258 = smul.addr %s255, 16
      %s259 = sadd.s32 %s257, %s258
      %s260 = smul.addr %s259, 8
      %s261 = scalar_lea.vmem %s4, %s260
      %p262 = scmp.lt.s32.totalorder %s19, 1
      %s263 = scalar_select %p262, %s19, 1
      %s264 = smul.addr %s263, 4
      %s265 = scalar_lea.vmem %s0, %s264
      %p266 = scmp.lt.s32.totalorder %s19, 1
      %s267 = scalar_select %p266, %s19, 1
      %p268 = scmp.lt.s32.totalorder %s20, 0
      %s269 = scalar_select %p268, %s20, 0
      %s270 = sadd.s32 %s269, %s267
      %s271 = smul.addr %s270, 8
      %s272 = scalar_lea.vmem %s1, %s271
      %p273 = scmp.lt.s32.totalorder %s19, 1
      %s274 = scalar_select %p273, %s19, 1
      %s275 = smul.addr %s274, 2
      %s276 = smul.addr %s275, 8
      %s277 = scalar_lea.vmem %s2, %s276
      %p278 = scmp.lt.s32.totalorder %s19, 1
      %s279 = scalar_select %p278, %s19, 1
      %p280 = scmp.lt.s32.totalorder %s20, 0
      %s281 = scalar_select %p280, %s20, 0
      %s282 = smul.addr %s279, 2
      %s283 = sadd.s32 %s281, %s282
      %s284 = smul.addr %s283, 8
      %s285 = scalar_lea.vmem %s3, %s284
      %p286 = scmp.lt.s32.totalorder %s19, 1
      %s287 = scalar_select %p286, %s19, 1
      %p288 = scmp.lt.s32.totalorder %s20, 0
      %s289 = scalar_select %p288, %s20, 0
      %s290 = smul.addr %s287, 16
      %s291 = sadd.s32 %s289, %s290
      %s292 = smul.addr %s291, 8
      %s293 = scalar_lea.vmem %s4, %s292
      %v294 = vld [vmem:[%s272] sm:$0xff]
      %v295 = vld [vmem:[%s265] sm:$0x1]
      %297 = vset.pattern.permute.xlu0 0
      %298 = vperm.xlu0 %297, %v294
      %v299 = vpop.permute.xlu0 %298
      %v301 = vlaneseq
      %v302 = vshrl.u32 %v301, 7
      %v303 = vsub.s32 0, %v302
      %v304 = vrot.slane %v295, %v303
      %v305 = vsub.f32 %v299, %v304
      %v306 = vmul.f32 %v305, %v305
      %v307 = vadd.f32 %v306, 0.0
      %v308 = vld [vmem:[%s265 + $0x1] sm:$0x1]
      %309 = vset.pattern.permute.xlu0 1
      %310 = vperm.xlu0 %309, %v294
      %v311 = vpop.permute.xlu0 %310
      %v313 = vlaneseq
      %v314 = vshrl.u32 %v313, 7
      %v315 = vsub.s32 0, %v314
      %v316 = vrot.slane %v308, %v315
      %v317 = vsub.f32 %v311, %v316
      %v318 = vmul.f32 %v317, %v317
      %v319 = vadd.f32 %v307, %v318
      %v320 = vld [vmem:[%s265 + $0x2] sm:$0x1]
      %321 = vset.pattern.permute.xlu0 2
      %322 = vperm.xlu0 %321, %v294
      %v323 = vpop.permute.xlu0 %322
      %v325 = vlaneseq
      %v326 = vshrl.u32 %v325, 7
      %v327 = vsub.s32 0, %v326
      %v328 = vrot.slane %v320, %v327
      %v329 = vsub.f32 %v323, %v328
      %v330 = vmul.f32 %v329, %v329
      %v331 = vadd.f32 %v319, %v330
      %vm332 = vcmp.lt.f32.partialorder %v331, 0.1225
      %v333 = vsel %vm332, 1, 0
      %v334 = vcvt.s32.f32 %v333
      %vm335 = vcmask 130048
      %v336 = vsel %vm335, %v334, 0.0
      %337 = vadd.xlane.f32.xlu0 %v336
      %v338 = vpop.xlane.xlu0 %337
      %v339 = vlaneseq
      %v340 = vand.u32 %v339, 127
      %vm341 = vcmp.eq.s32.totalorder %v340, 0
      %v342 = vsel %vm341, 1, 0
      %v343 = vcvt.s32.f32 %v342
      %v344 = vld [vmem:[%s277] sm:$0xff]
      %v345 = vld [vmem:[%s277 + $0x8] sm:$0x3]
      %v346 = vld [vmem:[%s285] sm:$0xff]
      %v347 = vld [vmem:[%s285 + $0x8] sm:$0x3]
      %v348 = vsel %vm332, %v340, 16
      %v349 = vsel %vm335, %v348, 2147483647
      %v350 = vand.u32 %v349, 65535
      %v351 = vshra.s32 %v349, 16
      %v352 = vcvt.s32.f32 %v350
      %v353 = vcvt.s32.f32 %v351
      %354 = vmin.xlane.f32.xlu0 %v353
      %v355 = vpop.xlane.xlu0 %354
      %vm356 = vcmp.eq.f32.partialorder %v353, %v355
      %v357 = vsel %vm356, %v352, inf
      %358 = vmin.xlane.f32.xlu0 %v357
      %v359 = vpop.xlane.xlu0 %358
      %v360 = vcvt.f32.s32 %v359
      %v361 = vcvt.f32.s32 %v355
      %v362 = vshll.u32 %v361, 16
      %v363 = vadd.s32 %v362, %v360
      %vm364 = vcmp.eq.s32.totalorder %v340, %v363
      %v365 = vsel %vm364, 1, 0
      %v366 = vcvt.s32.f32 %v365
      %vm367 = vcmp.gt.f32.partialorder %v338, 0.0
      %v368 = vsel %vm367, 1, 0
      %vm369 = vcmp.eq.s32.totalorder %v368, 1
      %v370 = vsel %vm369, %v366, %v343
      %vm371 = vcmp.ne.s32.totalorder %v340, %v363
      %vm372 = vmand %vm332, %vm371
      %v374 = vsel %vm335, %v344, 0
      %v377 = vsel %vm335, %v345, 0
      %v380 = vsel %vm335, %v370, 0
      %382 = vmatprep.subr.mxu0 0.0
      %383 = vmatpush1.xpose.msra.mxu0 0.0
      %384 = vmatprep.subr.mxu0 0.0
      %385 = vmatpush1.xpose.msra.mxu0 0.0
      %386 = vmatprep.subr.mxu0 0.0
      %387 = vmatpush1.xpose.msra.mxu0 0.0
      %388 = vmatprep.subr.mxu0 0.0
      %389 = vmatpush1.xpose.msra.mxu0 0.0
      %390 = vmatprep.subr.mxu0 0.0
      %391 = vmatpush1.xpose.msra.mxu0 0.0
      %392 = vmatprep.subr.mxu0 0.0
      %393 = vmatpush1.xpose.msra.mxu0 0.0
      %394 = vmatprep.subr.mxu0 0.0
      %395 = vmatpush1.xpose.msra.mxu0 0.0
      %396 = vmatprep.subr.mxu0 0.0
      %397 = vmatpush1.xpose.msra.mxu0 0.0
      %398 = vmatprep.subr.mxu0 0.0
      %399 = vmatpush1.xpose.msra.mxu0 0.0
      %400 = vmatprep.subr.mxu0 0.0
      %401 = vmatpush1.xpose.msra.mxu0 0.0
      %402 = vmatprep.subr.mxu0 0.0
      %403 = vmatpush1.xpose.msra.mxu0 0.0
      %404 = vmatprep.subr.mxu0 0.0
      %405 = vmatpush1.xpose.msra.mxu0 0.0
      %406 = vmatprep.subr.mxu0 0.0
      %407 = vmatpush1.xpose.msra.mxu0 0.0
      %408 = vmatprep.subr.mxu0 0.0
      %409 = vmatpush1.xpose.msra.mxu0 0.0
      %410 = vmatprep.subr.mxu0 0.0
      %411 = vmatpush1.xpose.msra.mxu0 0.0
      %412 = vmatprep.subr.mxu0 0.0
      %413 = vmatpush1.xpose.msra.mxu0 %v380
      %414 = vmatprep.subr.mxu0 0.0
      %415 = vmatpush2.xpose.msra.mxu0 0.0
      %416 = vmatprep.subr.mxu0 0.0
      %417 = vmatpush2.xpose.msra.mxu0 0.0
      %418 = vmatprep.subr.mxu0 0.0
      %419 = vmatpush2.xpose.msra.mxu0 0.0
      %420 = vmatprep.subr.mxu0 0.0
      %421 = vmatpush2.xpose.msra.mxu0 0.0
      %422 = vmatprep.subr.mxu0 0.0
      %423 = vmatpush2.xpose.msra.mxu0 0.0
      %424 = vmatprep.subr.mxu0 0.0
      %425 = vmatpush2.xpose.msra.mxu0 0.0
      %426 = vmatprep.subr.mxu0 0.0
      %427 = vmatpush2.xpose.msra.mxu0 0.0
      %428 = vmatprep.subr.mxu0 0.0
      %429 = vmatpush2.xpose.msra.mxu0 0.0
      %430 = vmatprep.subr.mxu0 0.0
      %431 = vmatpush2.xpose.msra.mxu0 0.0
      %432 = vmatprep.subr.mxu0 0.0
      %433 = vmatpush2.xpose.msra.mxu0 0.0
      %434 = vmatprep.subr.mxu0 0.0
      %435 = vmatpush2.xpose.msra.mxu0 0.0
      %436 = vmatprep.subr.mxu0 0.0
      %437 = vmatpush2.xpose.msra.mxu0 0.0
      %438 = vmatprep.subr.mxu0 0.0
      %439 = vmatpush2.xpose.msra.mxu0 0.0
      %440 = vmatprep.subr.mxu0 0.0
      %441 = vmatpush2.xpose.msra.mxu0 0.0
      %442 = vmatprep.subr.mxu0 0.0
      %443 = vmatpush2.xpose.msra.mxu0 0.0
      %444 = vmatprep.subr.mxu0 0.0
      %445 = vmatpush2.xpose.msra.mxu0 0.0
      %446 = vmatprep.mubr.f32.mxu0 0.0
      %447 = vmatmul.mubr.f32.gmra.mxu0 %v374
      %v448 = vpop.f32.mrf.mxu0
      %v449 = vadd.f32 0.0, %v448
      %v450 = vpop.f32.mrf.mxu0
      %451 = vmatprep.mubr.f32.mxu0 0.0
      %452 = vmatmul.mubr.f32.gmra.mxu0 %v377
      %v453 = vpop.f32.mrf.mxu0
      %v454 = vadd.f32 0.0, %v453
      %v455 = vpop.f32.mrf.mxu0
      %456 = vdwg.mxu0
      %v457 = vsub.f32 %v449, %v346
      %v458 = vsub.f32 %v454, %v347
      %vm459 = vcmask 64512
      %460 = vst.msk [vmem:[%s293] sm:$0xff] %vm459, %v457
      %vm461 = vcmask 58368
      %462 = vst.msk [vmem:[%s293 + $0x8] sm:$0x3] %vm461, %v458
      %v463 = vsel %vm372, %v340, 16
      %v464 = vsel %vm335, %v463, 2147483647
      %v465 = vand.u32 %v464, 65535
      %v466 = vshra.s32 %v464, 16
      %v467 = vcvt.s32.f32 %v465
      %v468 = vcvt.s32.f32 %v466
      %469 = vmin.xlane.f32.xlu0 %v468
      %v470 = vpop.xlane.xlu0 %469
      %vm471 = vcmp.eq.f32.partialorder %v468, %v470
      %v472 = vsel %vm471, %v467, inf
      %473 = vmin.xlane.f32.xlu0 %v472
      %v474 = vpop.xlane.xlu0 %473
      %v475 = vcvt.f32.s32 %v474
      %v476 = vcvt.f32.s32 %v470
      %v477 = vshll.u32 %v476, 16
      %v478 = vadd.s32 %v477, %v475
      %vm479 = vcmp.eq.s32.totalorder %v340, %v478
      %v480 = vsel %vm479, 1, 0
      %v481 = vcvt.s32.f32 %v480
      %vm482 = vcmp.gt.f32.partialorder %v338, 1.0
      %v483 = vsel %vm482, 1, 0
      %vm484 = vcmp.eq.s32.totalorder %v483, 1
      %v485 = vsel %vm484, %v481, %v370
      %vm486 = vcmp.ne.s32.totalorder %v340, %v478
      %vm487 = vmand %vm372, %vm486
      %v489 = vsel %vm335, %v485, 0
      %491 = vmatprep.subr.mxu0 0.0
      %492 = vmatpush1.xpose.msra.mxu0 0.0
      %493 = vmatprep.subr.mxu0 0.0
      %494 = vmatpush1.xpose.msra.mxu0 0.0
      %495 = vmatprep.subr.mxu0 0.0
      %496 = vmatpush1.xpose.msra.mxu0 0.0
      %497 = vmatprep.subr.mxu0 0.0
      %498 = vmatpush1.xpose.msra.mxu0 0.0
      %499 = vmatprep.subr.mxu0 0.0
      %500 = vmatpush1.xpose.msra.mxu0 0.0
      %501 = vmatprep.subr.mxu0 0.0
      %502 = vmatpush1.xpose.msra.mxu0 0.0
      %503 = vmatprep.subr.mxu0 0.0
      %504 = vmatpush1.xpose.msra.mxu0 0.0
      %505 = vmatprep.subr.mxu0 0.0
      %506 = vmatpush1.xpose.msra.mxu0 0.0
      %507 = vmatprep.subr.mxu0 0.0
      %508 = vmatpush1.xpose.msra.mxu0 0.0
      %509 = vmatprep.subr.mxu0 0.0
      %510 = vmatpush1.xpose.msra.mxu0 0.0
      %511 = vmatprep.subr.mxu0 0.0
      %512 = vmatpush1.xpose.msra.mxu0 0.0
      %513 = vmatprep.subr.mxu0 0.0
      %514 = vmatpush1.xpose.msra.mxu0 0.0
      %515 = vmatprep.subr.mxu0 0.0
      %516 = vmatpush1.xpose.msra.mxu0 0.0
      %517 = vmatprep.subr.mxu0 0.0
      %518 = vmatpush1.xpose.msra.mxu0 0.0
      %519 = vmatprep.subr.mxu0 0.0
      %520 = vmatpush1.xpose.msra.mxu0 0.0
      %521 = vmatprep.subr.mxu0 0.0
      %522 = vmatpush1.xpose.msra.mxu0 %v489
      %523 = vmatprep.subr.mxu0 0.0
      %524 = vmatpush2.xpose.msra.mxu0 0.0
      %525 = vmatprep.subr.mxu0 0.0
      %526 = vmatpush2.xpose.msra.mxu0 0.0
      %527 = vmatprep.subr.mxu0 0.0
      %528 = vmatpush2.xpose.msra.mxu0 0.0
      %529 = vmatprep.subr.mxu0 0.0
      %530 = vmatpush2.xpose.msra.mxu0 0.0
      %531 = vmatprep.subr.mxu0 0.0
      %532 = vmatpush2.xpose.msra.mxu0 0.0
      %533 = vmatprep.subr.mxu0 0.0
      %534 = vmatpush2.xpose.msra.mxu0 0.0
      %535 = vmatprep.subr.mxu0 0.0
      %536 = vmatpush2.xpose.msra.mxu0 0.0
      %537 = vmatprep.subr.mxu0 0.0
      %538 = vmatpush2.xpose.msra.mxu0 0.0
      %539 = vmatprep.subr.mxu0 0.0
      %540 = vmatpush2.xpose.msra.mxu0 0.0
      %541 = vmatprep.subr.mxu0 0.0
      %542 = vmatpush2.xpose.msra.mxu0 0.0
      %543 = vmatprep.subr.mxu0 0.0
      %544 = vmatpush2.xpose.msra.mxu0 0.0
      %545 = vmatprep.subr.mxu0 0.0
      %546 = vmatpush2.xpose.msra.mxu0 0.0
      %547 = vmatprep.subr.mxu0 0.0
      %548 = vmatpush2.xpose.msra.mxu0 0.0
      %549 = vmatprep.subr.mxu0 0.0
      %550 = vmatpush2.xpose.msra.mxu0 0.0
      %551 = vmatprep.subr.mxu0 0.0
      %552 = vmatpush2.xpose.msra.mxu0 0.0
      %553 = vmatprep.subr.mxu0 0.0
      %554 = vmatpush2.xpose.msra.mxu0 0.0
      %555 = vmatprep.mubr.f32.mxu0 0.0
      %556 = vmatmul.mubr.f32.gmra.mxu0 %v374
      %v557 = vpop.f32.mrf.mxu0
      %v558 = vadd.f32 0.0, %v557
      %v559 = vpop.f32.mrf.mxu0
      %560 = vmatprep.mubr.f32.mxu0 0.0
      %561 = vmatmul.mubr.f32.gmra.mxu0 %v377
      %v562 = vpop.f32.mrf.mxu0
      %v563 = vadd.f32 0.0, %v562
      %v564 = vpop.f32.mrf.mxu0
      %565 = vdwg.mxu0
      %v566 = vsub.f32 %v558, %v346
      %v567 = vsub.f32 %v563, %v347
      %s568 = scalar_lea.vmem %s293, 16
      %569 = vst.msk [vmem:[%s568] sm:$0xff] %vm459, %v566
      %570 = vst.msk [vmem:[%s568 + $0x8] sm:$0x3] %vm461, %v567
      %v571 = vsel %vm487, %v340, 16
      %v572 = vsel %vm335, %v571, 2147483647
      %v573 = vand.u32 %v572, 65535
      %v574 = vshra.s32 %v572, 16
      %v575 = vcvt.s32.f32 %v573
      %v576 = vcvt.s32.f32 %v574
      %577 = vmin.xlane.f32.xlu0 %v576
      %v578 = vpop.xlane.xlu0 %577
      %vm579 = vcmp.eq.f32.partialorder %v576, %v578
      %v580 = vsel %vm579, %v575, inf
      %581 = vmin.xlane.f32.xlu0 %v580
      %v582 = vpop.xlane.xlu0 %581
      %v583 = vcvt.f32.s32 %v582
      %v584 = vcvt.f32.s32 %v578
      %v585 = vshll.u32 %v584, 16
      %v586 = vadd.s32 %v585, %v583
      %vm587 = vcmp.eq.s32.totalorder %v340, %v586
      %v588 = vsel %vm587, 1, 0
      %v589 = vcvt.s32.f32 %v588
      %vm590 = vcmp.gt.f32.partialorder %v338, 2.0
      %v591 = vsel %vm590, 1, 0
      %vm592 = vcmp.eq.s32.totalorder %v591, 1
      %v593 = vsel %vm592, %v589, %v370
      %vm594 = vcmp.ne.s32.totalorder %v340, %v586
      %vm595 = vmand %vm487, %vm594
      %v597 = vsel %vm335, %v593, 0
      %599 = vmatprep.subr.mxu0 0.0
      %600 = vmatpush1.xpose.msra.mxu0 0.0
      %601 = vmatprep.subr.mxu0 0.0
      %602 = vmatpush1.xpose.msra.mxu0 0.0
      %603 = vmatprep.subr.mxu0 0.0
      %604 = vmatpush1.xpose.msra.mxu0 0.0
      %605 = vmatprep.subr.mxu0 0.0
      %606 = vmatpush1.xpose.msra.mxu0 0.0
      %607 = vmatprep.subr.mxu0 0.0
      %608 = vmatpush1.xpose.msra.mxu0 0.0
      %609 = vmatprep.subr.mxu0 0.0
      %610 = vmatpush1.xpose.msra.mxu0 0.0
      %611 = vmatprep.subr.mxu0 0.0
      %612 = vmatpush1.xpose.msra.mxu0 0.0
      %613 = vmatprep.subr.mxu0 0.0
      %614 = vmatpush1.xpose.msra.mxu0 0.0
      %615 = vmatprep.subr.mxu0 0.0
      %616 = vmatpush1.xpose.msra.mxu0 0.0
      %617 = vmatprep.subr.mxu0 0.0
      %618 = vmatpush1.xpose.msra.mxu0 0.0
      %619 = vmatprep.subr.mxu0 0.0
      %620 = vmatpush1.xpose.msra.mxu0 0.0
      %621 = vmatprep.subr.mxu0 0.0
      %622 = vmatpush1.xpose.msra.mxu0 0.0
      %623 = vmatprep.subr.mxu0 0.0
      %624 = vmatpush1.xpose.msra.mxu0 0.0
      %625 = vmatprep.subr.mxu0 0.0
      %626 = vmatpush1.xpose.msra.mxu0 0.0
      %627 = vmatprep.subr.mxu0 0.0
      %628 = vmatpush1.xpose.msra.mxu0 0.0
      %629 = vmatprep.subr.mxu0 0.0
      %630 = vmatpush1.xpose.msra.mxu0 %v597
      %631 = vmatprep.subr.mxu0 0.0
      %632 = vmatpush2.xpose.msra.mxu0 0.0
      %633 = vmatprep.subr.mxu0 0.0
      %634 = vmatpush2.xpose.msra.mxu0 0.0
      %635 = vmatprep.subr.mxu0 0.0
      %636 = vmatpush2.xpose.msra.mxu0 0.0
      %637 = vmatprep.subr.mxu0 0.0
      %638 = vmatpush2.xpose.msra.mxu0 0.0
      %639 = vmatprep.subr.mxu0 0.0
      %640 = vmatpush2.xpose.msra.mxu0 0.0
      %641 = vmatprep.subr.mxu0 0.0
      %642 = vmatpush2.xpose.msra.mxu0 0.0
      %643 = vmatprep.subr.mxu0 0.0
      %644 = vmatpush2.xpose.msra.mxu0 0.0
      %645 = vmatprep.subr.mxu0 0.0
      %646 = vmatpush2.xpose.msra.mxu0 0.0
      %647 = vmatprep.subr.mxu0 0.0
      %648 = vmatpush2.xpose.msra.mxu0 0.0
      %649 = vmatprep.subr.mxu0 0.0
      %650 = vmatpush2.xpose.msra.mxu0 0.0
      %651 = vmatprep.subr.mxu0 0.0
      %652 = vmatpush2.xpose.msra.mxu0 0.0
      %653 = vmatprep.subr.mxu0 0.0
      %654 = vmatpush2.xpose.msra.mxu0 0.0
      %655 = vmatprep.subr.mxu0 0.0
      %656 = vmatpush2.xpose.msra.mxu0 0.0
      %657 = vmatprep.subr.mxu0 0.0
      %658 = vmatpush2.xpose.msra.mxu0 0.0
      %659 = vmatprep.subr.mxu0 0.0
      %660 = vmatpush2.xpose.msra.mxu0 0.0
      %661 = vmatprep.subr.mxu0 0.0
      %662 = vmatpush2.xpose.msra.mxu0 0.0
      %663 = vmatprep.mubr.f32.mxu0 0.0
      %664 = vmatmul.mubr.f32.gmra.mxu0 %v374
      %v665 = vpop.f32.mrf.mxu0
      %v666 = vadd.f32 0.0, %v665
      %v667 = vpop.f32.mrf.mxu0
      %668 = vmatprep.mubr.f32.mxu0 0.0
      %669 = vmatmul.mubr.f32.gmra.mxu0 %v377
      %v670 = vpop.f32.mrf.mxu0
      %v671 = vadd.f32 0.0, %v670
      %v672 = vpop.f32.mrf.mxu0
      %673 = vdwg.mxu0
      %v674 = vsub.f32 %v666, %v346
      %v675 = vsub.f32 %v671, %v347
      %s676 = scalar_lea.vmem %s293, 32
      %677 = vst.msk [vmem:[%s676] sm:$0xff] %vm459, %v674
      %678 = vst.msk [vmem:[%s676 + $0x8] sm:$0x3] %vm461, %v675
      %v679 = vsel %vm595, %v340, 16
      %v680 = vsel %vm335, %v679, 2147483647
      %v681 = vand.u32 %v680, 65535
      %v682 = vshra.s32 %v680, 16
      %v683 = vcvt.s32.f32 %v681
      %v684 = vcvt.s32.f32 %v682
      %685 = vmin.xlane.f32.xlu0 %v684
      %v686 = vpop.xlane.xlu0 %685
      %vm687 = vcmp.eq.f32.partialorder %v684, %v686
      %v688 = vsel %vm687, %v683, inf
      %689 = vmin.xlane.f32.xlu0 %v688
      %v690 = vpop.xlane.xlu0 %689
      %v691 = vcvt.f32.s32 %v690
      %v692 = vcvt.f32.s32 %v686
      %v693 = vshll.u32 %v692, 16
      %v694 = vadd.s32 %v693, %v691
      %vm695 = vcmp.eq.s32.totalorder %v340, %v694
      %v696 = vsel %vm695, 1, 0
      %v697 = vcvt.s32.f32 %v696
      %vm698 = vcmp.gt.f32.partialorder %v338, 3.0
      %v699 = vsel %vm698, 1, 0
      %vm700 = vcmp.eq.s32.totalorder %v699, 1
      %v701 = vsel %vm700, %v697, %v370
      %vm702 = vcmp.ne.s32.totalorder %v340, %v694
      %vm703 = vmand %vm595, %vm702
      %v705 = vsel %vm335, %v701, 0
      %707 = vmatprep.subr.mxu0 0.0
      %708 = vmatpush1.xpose.msra.mxu0 0.0
      %709 = vmatprep.subr.mxu0 0.0
      %710 = vmatpush1.xpose.msra.mxu0 0.0
      %711 = vmatprep.subr.mxu0 0.0
      %712 = vmatpush1.xpose.msra.mxu0 0.0
      %713 = vmatprep.subr.mxu0 0.0
      %714 = vmatpush1.xpose.msra.mxu0 0.0
      %715 = vmatprep.subr.mxu0 0.0
      %716 = vmatpush1.xpose.msra.mxu0 0.0
      %717 = vmatprep.subr.mxu0 0.0
      %718 = vmatpush1.xpose.msra.mxu0 0.0
      %719 = vmatprep.subr.mxu0 0.0
      %720 = vmatpush1.xpose.msra.mxu0 0.0
      %721 = vmatprep.subr.mxu0 0.0
      %722 = vmatpush1.xpose.msra.mxu0 0.0
      %723 = vmatprep.subr.mxu0 0.0
      %724 = vmatpush1.xpose.msra.mxu0 0.0
      %725 = vmatprep.subr.mxu0 0.0
      %726 = vmatpush1.xpose.msra.mxu0 0.0
      %727 = vmatprep.subr.mxu0 0.0
      %728 = vmatpush1.xpose.msra.mxu0 0.0
      %729 = vmatprep.subr.mxu0 0.0
      %730 = vmatpush1.xpose.msra.mxu0 0.0
      %731 = vmatprep.subr.mxu0 0.0
      %732 = vmatpush1.xpose.msra.mxu0 0.0
      %733 = vmatprep.subr.mxu0 0.0
      %734 = vmatpush1.xpose.msra.mxu0 0.0
      %735 = vmatprep.subr.mxu0 0.0
      %736 = vmatpush1.xpose.msra.mxu0 0.0
      %737 = vmatprep.subr.mxu0 0.0
      %738 = vmatpush1.xpose.msra.mxu0 %v705
      %739 = vmatprep.subr.mxu0 0.0
      %740 = vmatpush2.xpose.msra.mxu0 0.0
      %741 = vmatprep.subr.mxu0 0.0
      %742 = vmatpush2.xpose.msra.mxu0 0.0
      %743 = vmatprep.subr.mxu0 0.0
      %744 = vmatpush2.xpose.msra.mxu0 0.0
      %745 = vmatprep.subr.mxu0 0.0
      %746 = vmatpush2.xpose.msra.mxu0 0.0
      %747 = vmatprep.subr.mxu0 0.0
      %748 = vmatpush2.xpose.msra.mxu0 0.0
      %749 = vmatprep.subr.mxu0 0.0
      %750 = vmatpush2.xpose.msra.mxu0 0.0
      %751 = vmatprep.subr.mxu0 0.0
      %752 = vmatpush2.xpose.msra.mxu0 0.0
      %753 = vmatprep.subr.mxu0 0.0
      %754 = vmatpush2.xpose.msra.mxu0 0.0
      %755 = vmatprep.subr.mxu0 0.0
      %756 = vmatpush2.xpose.msra.mxu0 0.0
      %757 = vmatprep.subr.mxu0 0.0
      %758 = vmatpush2.xpose.msra.mxu0 0.0
      %759 = vmatprep.subr.mxu0 0.0
      %760 = vmatpush2.xpose.msra.mxu0 0.0
      %761 = vmatprep.subr.mxu0 0.0
      %762 = vmatpush2.xpose.msra.mxu0 0.0
      %763 = vmatprep.subr.mxu0 0.0
      %764 = vmatpush2.xpose.msra.mxu0 0.0
      %765 = vmatprep.subr.mxu0 0.0
      %766 = vmatpush2.xpose.msra.mxu0 0.0
      %767 = vmatprep.subr.mxu0 0.0
      %768 = vmatpush2.xpose.msra.mxu0 0.0
      %769 = vmatprep.subr.mxu0 0.0
      %770 = vmatpush2.xpose.msra.mxu0 0.0
      %771 = vmatprep.mubr.f32.mxu0 0.0
      %772 = vmatmul.mubr.f32.gmra.mxu0 %v374
      %v773 = vpop.f32.mrf.mxu0
      %v774 = vadd.f32 0.0, %v773
      %v775 = vpop.f32.mrf.mxu0
      %776 = vmatprep.mubr.f32.mxu0 0.0
      %777 = vmatmul.mubr.f32.gmra.mxu0 %v377
      %v778 = vpop.f32.mrf.mxu0
      %v779 = vadd.f32 0.0, %v778
      %v780 = vpop.f32.mrf.mxu0
      %781 = vdwg.mxu0
      %v782 = vsub.f32 %v774, %v346
      %v783 = vsub.f32 %v779, %v347
      %s784 = scalar_lea.vmem %s293, 48
      %785 = vst.msk [vmem:[%s784] sm:$0xff] %vm459, %v782
      %786 = vst.msk [vmem:[%s784 + $0x8] sm:$0x3] %vm461, %v783
      %v787 = vsel %vm703, %v340, 16
      %v788 = vsel %vm335, %v787, 2147483647
      %v789 = vand.u32 %v788, 65535
      %v790 = vshra.s32 %v788, 16
      %v791 = vcvt.s32.f32 %v789
      %v792 = vcvt.s32.f32 %v790
      %793 = vmin.xlane.f32.xlu0 %v792
      %v794 = vpop.xlane.xlu0 %793
      %vm795 = vcmp.eq.f32.partialorder %v792, %v794
      %v796 = vsel %vm795, %v791, inf
      %797 = vmin.xlane.f32.xlu0 %v796
      %v798 = vpop.xlane.xlu0 %797
      %v799 = vcvt.f32.s32 %v798
      %v800 = vcvt.f32.s32 %v794
      %v801 = vshll.u32 %v800, 16
      %v802 = vadd.s32 %v801, %v799
      %vm803 = vcmp.eq.s32.totalorder %v340, %v802
      %v804 = vsel %vm803, 1, 0
      %v805 = vcvt.s32.f32 %v804
      %vm806 = vcmp.gt.f32.partialorder %v338, 4.0
      %v807 = vsel %vm806, 1, 0
      %vm808 = vcmp.eq.s32.totalorder %v807, 1
      %v809 = vsel %vm808, %v805, %v370
      %vm810 = vcmp.ne.s32.totalorder %v340, %v802
      %vm811 = vmand %vm703, %vm810
      %v813 = vsel %vm335, %v809, 0
      %815 = vmatprep.subr.mxu0 0.0
      %816 = vmatpush1.xpose.msra.mxu0 0.0
      %817 = vmatprep.subr.mxu0 0.0
      %818 = vmatpush1.xpose.msra.mxu0 0.0
      %819 = vmatprep.subr.mxu0 0.0
      %820 = vmatpush1.xpose.msra.mxu0 0.0
      %821 = vmatprep.subr.mxu0 0.0
      %822 = vmatpush1.xpose.msra.mxu0 0.0
      %823 = vmatprep.subr.mxu0 0.0
      %824 = vmatpush1.xpose.msra.mxu0 0.0
      %825 = vmatprep.subr.mxu0 0.0
      %826 = vmatpush1.xpose.msra.mxu0 0.0
      %827 = vmatprep.subr.mxu0 0.0
      %828 = vmatpush1.xpose.msra.mxu0 0.0
      %829 = vmatprep.subr.mxu0 0.0
      %830 = vmatpush1.xpose.msra.mxu0 0.0
      %831 = vmatprep.subr.mxu0 0.0
      %832 = vmatpush1.xpose.msra.mxu0 0.0
      %833 = vmatprep.subr.mxu0 0.0
      %834 = vmatpush1.xpose.msra.mxu0 0.0
      %835 = vmatprep.subr.mxu0 0.0
      %836 = vmatpush1.xpose.msra.mxu0 0.0
      %837 = vmatprep.subr.mxu0 0.0
      %838 = vmatpush1.xpose.msra.mxu0 0.0
      %839 = vmatprep.subr.mxu0 0.0
      %840 = vmatpush1.xpose.msra.mxu0 0.0
      %841 = vmatprep.subr.mxu0 0.0
      %842 = vmatpush1.xpose.msra.mxu0 0.0
      %843 = vmatprep.subr.mxu0 0.0
      %844 = vmatpush1.xpose.msra.mxu0 0.0
      %845 = vmatprep.subr.mxu0 0.0
      %846 = vmatpush1.xpose.msra.mxu0 %v813
      %847 = vmatprep.subr.mxu0 0.0
      %848 = vmatpush2.xpose.msra.mxu0 0.0
      %849 = vmatprep.subr.mxu0 0.0
      %850 = vmatpush2.xpose.msra.mxu0 0.0
      %851 = vmatprep.subr.mxu0 0.0
      %852 = vmatpush2.xpose.msra.mxu0 0.0
      %853 = vmatprep.subr.mxu0 0.0
      %854 = vmatpush2.xpose.msra.mxu0 0.0
      %855 = vmatprep.subr.mxu0 0.0
      %856 = vmatpush2.xpose.msra.mxu0 0.0
      %857 = vmatprep.subr.mxu0 0.0
      %858 = vmatpush2.xpose.msra.mxu0 0.0
      %859 = vmatprep.subr.mxu0 0.0
      %860 = vmatpush2.xpose.msra.mxu0 0.0
      %861 = vmatprep.subr.mxu0 0.0
      %862 = vmatpush2.xpose.msra.mxu0 0.0
      %863 = vmatprep.subr.mxu0 0.0
      %864 = vmatpush2.xpose.msra.mxu0 0.0
      %865 = vmatprep.subr.mxu0 0.0
      %866 = vmatpush2.xpose.msra.mxu0 0.0
      %867 = vmatprep.subr.mxu0 0.0
      %868 = vmatpush2.xpose.msra.mxu0 0.0
      %869 = vmatprep.subr.mxu0 0.0
      %870 = vmatpush2.xpose.msra.mxu0 0.0
      %871 = vmatprep.subr.mxu0 0.0
      %872 = vmatpush2.xpose.msra.mxu0 0.0
      %873 = vmatprep.subr.mxu0 0.0
      %874 = vmatpush2.xpose.msra.mxu0 0.0
      %875 = vmatprep.subr.mxu0 0.0
      %876 = vmatpush2.xpose.msra.mxu0 0.0
      %877 = vmatprep.subr.mxu0 0.0
      %878 = vmatpush2.xpose.msra.mxu0 0.0
      %879 = vmatprep.mubr.f32.mxu0 0.0
      %880 = vmatmul.mubr.f32.gmra.mxu0 %v374
      %v881 = vpop.f32.mrf.mxu0
      %v882 = vadd.f32 0.0, %v881
      %v883 = vpop.f32.mrf.mxu0
      %884 = vmatprep.mubr.f32.mxu0 0.0
      %885 = vmatmul.mubr.f32.gmra.mxu0 %v377
      %v886 = vpop.f32.mrf.mxu0
      %v887 = vadd.f32 0.0, %v886
      %v888 = vpop.f32.mrf.mxu0
      %889 = vdwg.mxu0
      %v890 = vsub.f32 %v882, %v346
      %v891 = vsub.f32 %v887, %v347
      %s892 = scalar_lea.vmem %s293, 64
      %893 = vst.msk [vmem:[%s892] sm:$0xff] %vm459, %v890
      %894 = vst.msk [vmem:[%s892 + $0x8] sm:$0x3] %vm461, %v891
      %v895 = vsel %vm811, %v340, 16
      %v896 = vsel %vm335, %v895, 2147483647
      %v897 = vand.u32 %v896, 65535
      %v898 = vshra.s32 %v896, 16
      %v899 = vcvt.s32.f32 %v897
      %v900 = vcvt.s32.f32 %v898
      %901 = vmin.xlane.f32.xlu0 %v900
      %v902 = vpop.xlane.xlu0 %901
      %vm903 = vcmp.eq.f32.partialorder %v900, %v902
      %v904 = vsel %vm903, %v899, inf
      %905 = vmin.xlane.f32.xlu0 %v904
      %v906 = vpop.xlane.xlu0 %905
      %v907 = vcvt.f32.s32 %v906
      %v908 = vcvt.f32.s32 %v902
      %v909 = vshll.u32 %v908, 16
      %v910 = vadd.s32 %v909, %v907
      %vm911 = vcmp.eq.s32.totalorder %v340, %v910
      %v912 = vsel %vm911, 1, 0
      %v913 = vcvt.s32.f32 %v912
      %vm914 = vcmp.gt.f32.partialorder %v338, 5.0
      %v915 = vsel %vm914, 1, 0
      %vm916 = vcmp.eq.s32.totalorder %v915, 1
      %v917 = vsel %vm916, %v913, %v370
      %vm918 = vcmp.ne.s32.totalorder %v340, %v910
      %vm919 = vmand %vm811, %vm918
      %v921 = vsel %vm335, %v917, 0
      %923 = vmatprep.subr.mxu0 0.0
      %924 = vmatpush1.xpose.msra.mxu0 0.0
      %925 = vmatprep.subr.mxu0 0.0
      %926 = vmatpush1.xpose.msra.mxu0 0.0
      %927 = vmatprep.subr.mxu0 0.0
      %928 = vmatpush1.xpose.msra.mxu0 0.0
      %929 = vmatprep.subr.mxu0 0.0
      %930 = vmatpush1.xpose.msra.mxu0 0.0
      %931 = vmatprep.subr.mxu0 0.0
      %932 = vmatpush1.xpose.msra.mxu0 0.0
      %933 = vmatprep.subr.mxu0 0.0
      %934 = vmatpush1.xpose.msra.mxu0 0.0
      %935 = vmatprep.subr.mxu0 0.0
      %936 = vmatpush1.xpose.msra.mxu0 0.0
      %937 = vmatprep.subr.mxu0 0.0
      %938 = vmatpush1.xpose.msra.mxu0 0.0
      %939 = vmatprep.subr.mxu0 0.0
      %940 = vmatpush1.xpose.msra.mxu0 0.0
      %941 = vmatprep.subr.mxu0 0.0
      %942 = vmatpush1.xpose.msra.mxu0 0.0
      %943 = vmatprep.subr.mxu0 0.0
      %944 = vmatpush1.xpose.msra.mxu0 0.0
      %945 = vmatprep.subr.mxu0 0.0
      %946 = vmatpush1.xpose.msra.mxu0 0.0
      %947 = vmatprep.subr.mxu0 0.0
      %948 = vmatpush1.xpose.msra.mxu0 0.0
      %949 = vmatprep.subr.mxu0 0.0
      %950 = vmatpush1.xpose.msra.mxu0 0.0
      %951 = vmatprep.subr.mxu0 0.0
      %952 = vmatpush1.xpose.msra.mxu0 0.0
      %953 = vmatprep.subr.mxu0 0.0
      %954 = vmatpush1.xpose.msra.mxu0 %v921
      %955 = vmatprep.subr.mxu0 0.0
      %956 = vmatpush2.xpose.msra.mxu0 0.0
      %957 = vmatprep.subr.mxu0 0.0
      %958 = vmatpush2.xpose.msra.mxu0 0.0
      %959 = vmatprep.subr.mxu0 0.0
      %960 = vmatpush2.xpose.msra.mxu0 0.0
      %961 = vmatprep.subr.mxu0 0.0
      %962 = vmatpush2.xpose.msra.mxu0 0.0
      %963 = vmatprep.subr.mxu0 0.0
      %964 = vmatpush2.xpose.msra.mxu0 0.0
      %965 = vmatprep.subr.mxu0 0.0
      %966 = vmatpush2.xpose.msra.mxu0 0.0
      %967 = vmatprep.subr.mxu0 0.0
      %968 = vmatpush2.xpose.msra.mxu0 0.0
      %969 = vmatprep.subr.mxu0 0.0
      %970 = vmatpush2.xpose.msra.mxu0 0.0
      %971 = vmatprep.subr.mxu0 0.0
      %972 = vmatpush2.xpose.msra.mxu0 0.0
      %973 = vmatprep.subr.mxu0 0.0
      %974 = vmatpush2.xpose.msra.mxu0 0.0
      %975 = vmatprep.subr.mxu0 0.0
      %976 = vmatpush2.xpose.msra.mxu0 0.0
      %977 = vmatprep.subr.mxu0 0.0
      %978 = vmatpush2.xpose.msra.mxu0 0.0
      %979 = vmatprep.subr.mxu0 0.0
      %980 = vmatpush2.xpose.msra.mxu0 0.0
      %981 = vmatprep.subr.mxu0 0.0
      %982 = vmatpush2.xpose.msra.mxu0 0.0
      %983 = vmatprep.subr.mxu0 0.0
      %984 = vmatpush2.xpose.msra.mxu0 0.0
      %985 = vmatprep.subr.mxu0 0.0
      %986 = vmatpush2.xpose.msra.mxu0 0.0
      %987 = vmatprep.mubr.f32.mxu0 0.0
      %988 = vmatmul.mubr.f32.gmra.mxu0 %v374
      %v989 = vpop.f32.mrf.mxu0
      %v990 = vadd.f32 0.0, %v989
      %v991 = vpop.f32.mrf.mxu0
      %992 = vmatprep.mubr.f32.mxu0 0.0
      %993 = vmatmul.mubr.f32.gmra.mxu0 %v377
      %v994 = vpop.f32.mrf.mxu0
      %v995 = vadd.f32 0.0, %v994
      %v996 = vpop.f32.mrf.mxu0
      %997 = vdwg.mxu0
      %v998 = vsub.f32 %v990, %v346
      %v999 = vsub.f32 %v995, %v347
      %s1000 = scalar_lea.vmem %s293, 80
      %1001 = vst.msk [vmem:[%s1000] sm:$0xff] %vm459, %v998
      %1002 = vst.msk [vmem:[%s1000 + $0x8] sm:$0x3] %vm461, %v999
      %v1003 = vsel %vm919, %v340, 16
      %v1004 = vsel %vm335, %v1003, 2147483647
      %v1005 = vand.u32 %v1004, 65535
      %v1006 = vshra.s32 %v1004, 16
      %v1007 = vcvt.s32.f32 %v1005
      %v1008 = vcvt.s32.f32 %v1006
      %1009 = vmin.xlane.f32.xlu0 %v1008
      %v1010 = vpop.xlane.xlu0 %1009
      %vm1011 = vcmp.eq.f32.partialorder %v1008, %v1010
      %v1012 = vsel %vm1011, %v1007, inf
      %1013 = vmin.xlane.f32.xlu0 %v1012
      %v1014 = vpop.xlane.xlu0 %1013
      %v1015 = vcvt.f32.s32 %v1014
      %v1016 = vcvt.f32.s32 %v1010
      %v1017 = vshll.u32 %v1016, 16
      %v1018 = vadd.s32 %v1017, %v1015
      %vm1019 = vcmp.eq.s32.totalorder %v340, %v1018
      %v1020 = vsel %vm1019, 1, 0
      %v1021 = vcvt.s32.f32 %v1020
      %vm1022 = vcmp.gt.f32.partialorder %v338, 6.0
      %v1023 = vsel %vm1022, 1, 0
      %vm1024 = vcmp.eq.s32.totalorder %v1023, 1
      %v1025 = vsel %vm1024, %v1021, %v370
      %vm1026 = vcmp.ne.s32.totalorder %v340, %v1018
      %vm1027 = vmand %vm919, %vm1026
      %v1029 = vsel %vm335, %v1025, 0
      %1031 = vmatprep.subr.mxu0 0.0
      %1032 = vmatpush1.xpose.msra.mxu0 0.0
      %1033 = vmatprep.subr.mxu0 0.0
      %1034 = vmatpush1.xpose.msra.mxu0 0.0
      %1035 = vmatprep.subr.mxu0 0.0
      %1036 = vmatpush1.xpose.msra.mxu0 0.0
      %1037 = vmatprep.subr.mxu0 0.0
      %1038 = vmatpush1.xpose.msra.mxu0 0.0
      %1039 = vmatprep.subr.mxu0 0.0
      %1040 = vmatpush1.xpose.msra.mxu0 0.0
      %1041 = vmatprep.subr.mxu0 0.0
      %1042 = vmatpush1.xpose.msra.mxu0 0.0
      %1043 = vmatprep.subr.mxu0 0.0
      %1044 = vmatpush1.xpose.msra.mxu0 0.0
      %1045 = vmatprep.subr.mxu0 0.0
      %1046 = vmatpush1.xpose.msra.mxu0 0.0
      %1047 = vmatprep.subr.mxu0 0.0
      %1048 = vmatpush1.xpose.msra.mxu0 0.0
      %1049 = vmatprep.subr.mxu0 0.0
      %1050 = vmatpush1.xpose.msra.mxu0 0.0
      %1051 = vmatprep.subr.mxu0 0.0
      %1052 = vmatpush1.xpose.msra.mxu0 0.0
      %1053 = vmatprep.subr.mxu0 0.0
      %1054 = vmatpush1.xpose.msra.mxu0 0.0
      %1055 = vmatprep.subr.mxu0 0.0
      %1056 = vmatpush1.xpose.msra.mxu0 0.0
      %1057 = vmatprep.subr.mxu0 0.0
      %1058 = vmatpush1.xpose.msra.mxu0 0.0
      %1059 = vmatprep.subr.mxu0 0.0
      %1060 = vmatpush1.xpose.msra.mxu0 0.0
      %1061 = vmatprep.subr.mxu0 0.0
      %1062 = vmatpush1.xpose.msra.mxu0 %v1029
      %1063 = vmatprep.subr.mxu0 0.0
      %1064 = vmatpush2.xpose.msra.mxu0 0.0
      %1065 = vmatprep.subr.mxu0 0.0
      %1066 = vmatpush2.xpose.msra.mxu0 0.0
      %1067 = vmatprep.subr.mxu0 0.0
      %1068 = vmatpush2.xpose.msra.mxu0 0.0
      %1069 = vmatprep.subr.mxu0 0.0
      %1070 = vmatpush2.xpose.msra.mxu0 0.0
      %1071 = vmatprep.subr.mxu0 0.0
      %1072 = vmatpush2.xpose.msra.mxu0 0.0
      %1073 = vmatprep.subr.mxu0 0.0
      %1074 = vmatpush2.xpose.msra.mxu0 0.0
      %1075 = vmatprep.subr.mxu0 0.0
      %1076 = vmatpush2.xpose.msra.mxu0 0.0
      %1077 = vmatprep.subr.mxu0 0.0
      %1078 = vmatpush2.xpose.msra.mxu0 0.0
      %1079 = vmatprep.subr.mxu0 0.0
      %1080 = vmatpush2.xpose.msra.mxu0 0.0
      %1081 = vmatprep.subr.mxu0 0.0
      %1082 = vmatpush2.xpose.msra.mxu0 0.0
      %1083 = vmatprep.subr.mxu0 0.0
      %1084 = vmatpush2.xpose.msra.mxu0 0.0
      %1085 = vmatprep.subr.mxu0 0.0
      %1086 = vmatpush2.xpose.msra.mxu0 0.0
      %1087 = vmatprep.subr.mxu0 0.0
      %1088 = vmatpush2.xpose.msra.mxu0 0.0
      %1089 = vmatprep.subr.mxu0 0.0
      %1090 = vmatpush2.xpose.msra.mxu0 0.0
      %1091 = vmatprep.subr.mxu0 0.0
      %1092 = vmatpush2.xpose.msra.mxu0 0.0
      %1093 = vmatprep.subr.mxu0 0.0
      %1094 = vmatpush2.xpose.msra.mxu0 0.0
      %1095 = vmatprep.mubr.f32.mxu0 0.0
      %1096 = vmatmul.mubr.f32.gmra.mxu0 %v374
      %v1097 = vpop.f32.mrf.mxu0
      %v1098 = vadd.f32 0.0, %v1097
      %v1099 = vpop.f32.mrf.mxu0
      %1100 = vmatprep.mubr.f32.mxu0 0.0
      %1101 = vmatmul.mubr.f32.gmra.mxu0 %v377
      %v1102 = vpop.f32.mrf.mxu0
      %v1103 = vadd.f32 0.0, %v1102
      %v1104 = vpop.f32.mrf.mxu0
      %1105 = vdwg.mxu0
      %v1106 = vsub.f32 %v1098, %v346
      %v1107 = vsub.f32 %v1103, %v347
      %s1108 = scalar_lea.vmem %s293, 96
      %1109 = vst.msk [vmem:[%s1108] sm:$0xff] %vm459, %v1106
      %1110 = vst.msk [vmem:[%s1108 + $0x8] sm:$0x3] %vm461, %v1107
      %v1111 = vsel %vm1027, %v340, 16
      %v1112 = vsel %vm335, %v1111, 2147483647
      %v1113 = vand.u32 %v1112, 65535
      %v1114 = vshra.s32 %v1112, 16
      %v1115 = vcvt.s32.f32 %v1113
      %v1116 = vcvt.s32.f32 %v1114
      %1117 = vmin.xlane.f32.xlu0 %v1116
      %v1118 = vpop.xlane.xlu0 %1117
      %vm1119 = vcmp.eq.f32.partialorder %v1116, %v1118
      %v1120 = vsel %vm1119, %v1115, inf
      %1121 = vmin.xlane.f32.xlu0 %v1120
      %v1122 = vpop.xlane.xlu0 %1121
      %v1123 = vcvt.f32.s32 %v1122
      %v1124 = vcvt.f32.s32 %v1118
      %v1125 = vshll.u32 %v1124, 16
      %v1126 = vadd.s32 %v1125, %v1123
      %vm1127 = vcmp.eq.s32.totalorder %v340, %v1126
      %v1128 = vsel %vm1127, 1, 0
      %v1129 = vcvt.s32.f32 %v1128
      %vm1130 = vcmp.gt.f32.partialorder %v338, 7.0
      %v1131 = vsel %vm1130, 1, 0
      %vm1132 = vcmp.eq.s32.totalorder %v1131, 1
      %v1133 = vsel %vm1132, %v1129, %v370
      %v1135 = vsel %vm335, %v1133, 0
      %1137 = vmatprep.subr.mxu0 0.0
      %1138 = vmatpush1.xpose.msra.mxu0 0.0
      %1139 = vmatprep.subr.mxu0 0.0
      %1140 = vmatpush1.xpose.msra.mxu0 0.0
      %1141 = vmatprep.subr.mxu0 0.0
      %1142 = vmatpush1.xpose.msra.mxu0 0.0
      %1143 = vmatprep.subr.mxu0 0.0
      %1144 = vmatpush1.xpose.msra.mxu0 0.0
      %1145 = vmatprep.subr.mxu0 0.0
      %1146 = vmatpush1.xpose.msra.mxu0 0.0
      %1147 = vmatprep.subr.mxu0 0.0
      %1148 = vmatpush1.xpose.msra.mxu0 0.0
      %1149 = vmatprep.subr.mxu0 0.0
      %1150 = vmatpush1.xpose.msra.mxu0 0.0
      %1151 = vmatprep.subr.mxu0 0.0
      %1152 = vmatpush1.xpose.msra.mxu0 0.0
      %1153 = vmatprep.subr.mxu0 0.0
      %1154 = vmatpush1.xpose.msra.mxu0 0.0
      %1155 = vmatprep.subr.mxu0 0.0
      %1156 = vmatpush1.xpose.msra.mxu0 0.0
      %1157 = vmatprep.subr.mxu0 0.0
      %1158 = vmatpush1.xpose.msra.mxu0 0.0
      %1159 = vmatprep.subr.mxu0 0.0
      %1160 = vmatpush1.xpose.msra.mxu0 0.0
      %1161 = vmatprep.subr.mxu0 0.0
      %1162 = vmatpush1.xpose.msra.mxu0 0.0
      %1163 = vmatprep.subr.mxu0 0.0
      %1164 = vmatpush1.xpose.msra.mxu0 0.0
      %1165 = vmatprep.subr.mxu0 0.0
      %1166 = vmatpush1.xpose.msra.mxu0 0.0
      %1167 = vmatprep.subr.mxu0 0.0
      %1168 = vmatpush1.xpose.msra.mxu0 %v1135
      %1169 = vmatprep.subr.mxu0 0.0
      %1170 = vmatpush2.xpose.msra.mxu0 0.0
      %1171 = vmatprep.subr.mxu0 0.0
      %1172 = vmatpush2.xpose.msra.mxu0 0.0
      %1173 = vmatprep.subr.mxu0 0.0
      %1174 = vmatpush2.xpose.msra.mxu0 0.0
      %1175 = vmatprep.subr.mxu0 0.0
      %1176 = vmatpush2.xpose.msra.mxu0 0.0
      %1177 = vmatprep.subr.mxu0 0.0
      %1178 = vmatpush2.xpose.msra.mxu0 0.0
      %1179 = vmatprep.subr.mxu0 0.0
      %1180 = vmatpush2.xpose.msra.mxu0 0.0
      %1181 = vmatprep.subr.mxu0 0.0
      %1182 = vmatpush2.xpose.msra.mxu0 0.0
      %1183 = vmatprep.subr.mxu0 0.0
      %1184 = vmatpush2.xpose.msra.mxu0 0.0
      %1185 = vmatprep.subr.mxu0 0.0
      %1186 = vmatpush2.xpose.msra.mxu0 0.0
      %1187 = vmatprep.subr.mxu0 0.0
      %1188 = vmatpush2.xpose.msra.mxu0 0.0
      %1189 = vmatprep.subr.mxu0 0.0
      %1190 = vmatpush2.xpose.msra.mxu0 0.0
      %1191 = vmatprep.subr.mxu0 0.0
      %1192 = vmatpush2.xpose.msra.mxu0 0.0
      %1193 = vmatprep.subr.mxu0 0.0
      %1194 = vmatpush2.xpose.msra.mxu0 0.0
      %1195 = vmatprep.subr.mxu0 0.0
      %1196 = vmatpush2.xpose.msra.mxu0 0.0
      %1197 = vmatprep.subr.mxu0 0.0
      %1198 = vmatpush2.xpose.msra.mxu0 0.0
      %1199 = vmatprep.subr.mxu0 0.0
      %1200 = vmatpush2.xpose.msra.mxu0 0.0
      %1201 = vmatprep.mubr.f32.mxu0 0.0
      %1202 = vmatmul.mubr.f32.gmra.mxu0 %v374
      %v1203 = vpop.f32.mrf.mxu0
      %v1204 = vadd.f32 0.0, %v1203
      %v1205 = vpop.f32.mrf.mxu0
      %1206 = vmatprep.mubr.f32.mxu0 0.0
      %1207 = vmatmul.mubr.f32.gmra.mxu0 %v377
      %v1208 = vpop.f32.mrf.mxu0
      %v1209 = vadd.f32 0.0, %v1208
      %v1210 = vpop.f32.mrf.mxu0
      %1211 = vdwg.mxu0
      %v1212 = vsub.f32 %v1204, %v346
      %v1213 = vsub.f32 %v1209, %v347
      %s1214 = scalar_lea.vmem %s293, 112
      %1215 = vst.msk [vmem:[%s1214] sm:$0xff] %vm459, %v1212
      %1216 = vst.msk [vmem:[%s1214 + $0x8] sm:$0x3] %vm461, %v1213
      %p1217 = scmp.lt.s32.totalorder %s19, 1
      %s1218 = scalar_select %p1217, %s19, 1
      %p1219 = scmp.lt.s32.totalorder %s20, 0
      %s1220 = scalar_select %p1219, %s20, 0
      %s1221 = smul.addr %s1218, 16
      %s1222 = sadd.s32 %s1220, %s1221
      %s1223 = smul.addr %s1222, 8
      %s1224 = scalar_lea.vmem %s4, %s1223
      // Predicated region
      $region37: #{tpu_custom_call.1} parent=35 // pred_check
        %p1225 = pneg %p155
      $region38: #{tpu_custom_call.1} parent=35 // pred_check_branch
        %1227 = sbr.rel (%p1225) target = $region40
      $region39: #{tpu_custom_call.1} parent=35 // pred_region
        _
      $region40: #{tpu_custom_call.1} parent=35 // pred_fallthru
        _
    $region36: #{tpu_custom_call.1} parent=5 // pred_fallthru
      _
    %p1228 = scmp.le.s32.totalorder 2, %s10
    // Predicated region
    $region41: #{tpu_custom_call.1} parent=5 // pred_check
      %p1229 = pneg %p1228
    $region42: #{tpu_custom_call.1} parent=5 // pred_check_branch
      %1231 = sbr.rel (%p1229) target = $region44
    $region43: #{tpu_custom_call.1} parent=5 // pred_region
      %s1232 = ssub.s32 %s10, 2
      // Predicated region
      $region45: #{tpu_custom_call.1} parent=43 // pred_check
        %p1233 = pneg %p161
      $region46: #{tpu_custom_call.1} parent=43 // pred_check_branch
        %1235 = sbr.rel (%p1233) target = $region48
      $region47: #{tpu_custom_call.1} parent=43 // pred_region
        %p1236 = scmp.lt.s32.totalorder %s21, 1
        %s1237 = scalar_select %p1236, %s21, 1
        %p1238 = scmp.lt.s32.totalorder %s22, 0
        %s1239 = scalar_select %p1238, %s22, 0
        %s1240 = smul.addr %s1237, 16
        %s1241 = sadd.s32 %s1239, %s1240
        %s1242 = smul.addr %s1241, 8
        %s1243 = scalar_lea.vmem %s4, %s1242
      $region48: #{tpu_custom_call.1} parent=43 // pred_fallthru
        _
    $region44: #{tpu_custom_call.1} parent=5 // pred_fallthru
      _
  $region6: #{tpu_custom_call.1} parent=0 // loop_footer
    %s14 = sadd.s32 1, %s10
  $region7: #{tpu_custom_call.1} parent=0 // loop_footer_branch
    %9 = sbr.rel target = $region3
  $region8: #{tpu_custom_call.1} parent=0 // loop_exit
    _

</llo_original>
